<compile_context>
chip_gen: v7x
topology: tpu7x:2x2x1
jax: 0.10.0
libtpu: 0.0.40
codegen_flags: <defaults>
</compile_context>

<pallas_src>
import functools
import math

import jax
import jax.numpy as jnp
from jax.experimental import pallas as pl
from jax.experimental.pallas import tpu as pltpu


# ---------------------------------------------------------------------------
# Fused kernel: one (batch tile, encoder layer) per grid step
# + fused classifier head on the last layer step.
# ---------------------------------------------------------------------------
def txl_layer_kernel(x_ref, wqkv_ref, bqkv_ref, wo_ref, bo_ref,
                     w1_ref, b1_ref, w2_ref, b2_ref,
                     ln1w_ref, ln1b_ref, ln2w_ref, ln2b_ref,
                     fcw_ref, fcb_ref,
                     out_ref, act_ref, *, n_heads, ff_tile):
    l = pl.program_id(1)                               # layer index (inner axis)

    @pl.when(l == 0)
    def _():
        # load this batch tile's embeddings into the VMEM-resident activation
        act_ref[...] = x_ref[0]

    x = act_ref[...]                                   # (S, D) f32
    S, D = x.shape
    H = n_heads
    hd = D // H

    # ---- fused QKV projection: one lane-dense (S, D) @ (D, 3D) matmul ----
    xb = x.astype(jnp.bfloat16)                        # bf16 MXU operand
    qkv = (jnp.dot(xb, wqkv_ref[0], preferred_element_type=jnp.float32)
           + bqkv_ref[0])                              # (S, 3D) f32
    # NOTE: at production sizes D is a multiple of 128, so the q/k/v lane
    # slices below are aligned views; the head split is a small relayout.
    def split_heads(t):                                # (S, D) -> (H, S, hd)
        return jnp.transpose(t.reshape(S, H, hd), (1, 0, 2))

    q = split_heads(qkv[:, :D])                        # 1/sqrt(hd) folded into Wq/bq
    k = split_heads(qkv[:, D:2 * D])
    v = split_heads(qkv[:, 2 * D:])

    # ---- self-attention for this batch element (no cross-batch mask needed) ----
    s = jnp.einsum("hqd,hkd->hqk",
                   q.astype(jnp.bfloat16), k.astype(jnp.bfloat16),
                   preferred_element_type=jnp.float32)           # (H, S, S) f32
    # softmax in f32; divide moved to the EUP via approximate reciprocal
    s = s - jnp.max(s, axis=-1, keepdims=True)
    p = jnp.exp(s)
    p = p * pl.reciprocal(jnp.sum(p, axis=-1, keepdims=True), approx=True)

    ctx = jnp.einsum("hqk,hkd->hqd",
                     p.astype(jnp.bfloat16), v.astype(jnp.bfloat16),
                     preferred_element_type=jnp.float32)         # (H, S, hd)
    # concatenate heads (head-major, matching PyTorch) -> single (D,D) out-proj
    ctx = jnp.transpose(ctx, (1, 0, 2)).reshape(S, D)
    attn_out = (jnp.dot(ctx.astype(jnp.bfloat16), wo_ref[0],
                        preferred_element_type=jnp.float32) + bo_ref[0])

    # ---- residual + LayerNorm 1 (f32 VPU math) ----
    x = x + attn_out
    mu = jnp.mean(x, axis=-1, keepdims=True)
    var = jnp.mean((x - mu) ** 2, axis=-1, keepdims=True)
    x = (x - mu) * jax.lax.rsqrt(var + 1e-5) * ln1w_ref[0] + ln1b_ref[0]

    # ---- position-wise feed forward, tiled over d_ff (no (S, F) f32 blob) ----
    xb2 = x.astype(jnp.bfloat16)
    F = w1_ref.shape[-1]
    ff = None
    for lo in range(0, F, ff_tile):                    # static, unrolled
        hi = min(F, lo + ff_tile)
        h1 = (jnp.dot(xb2, w1_ref[0, :, lo:hi],
                      preferred_element_type=jnp.float32) + b1_ref[0, :, lo:hi])
        h1 = jnp.maximum(h1, 0.0)                      # ReLU
        part = jnp.dot(h1.astype(jnp.bfloat16), w2_ref[0, lo:hi, :],
                       preferred_element_type=jnp.float32)
        ff = part if ff is None else ff + part
    ff = ff + b2_ref[0]

    # ---- residual + LayerNorm 2 (f32) ----
    x = x + ff
    mu = jnp.mean(x, axis=-1, keepdims=True)
    var = jnp.mean((x - mu) ** 2, axis=-1, keepdims=True)
    x = (x - mu) * jax.lax.rsqrt(var + 1e-5) * ln2w_ref[0] + ln2b_ref[0]

    act_ref[...] = x                                   # carry to next layer step

    # ---- fused classifier head on the last layer step of this batch tile ----
    @pl.when(l == pl.num_programs(1) - 1)
    def _():
        pooled = jnp.mean(x, axis=0, keepdims=True)    # mean over S, (1, D) f32
        out_ref[0] = (jnp.dot(pooled.astype(jnp.bfloat16), fcw_ref[...],
                              preferred_element_type=jnp.float32)
                      + fcb_ref[...])                  # (1, Cp) lane-dense store


# ---------------------------------------------------------------------------
# Host-side parameter repacking (one-time layout transform)
# ---------------------------------------------------------------------------
def _round_up(x, m):
    return ((x + m - 1) // m) * m


def pack_params(params, n_heads):
    """Repack PyTorch-layout parameters for the fused kernel: pre-transposed,
    stacked over layers, matmul weights bf16, attention scale folded into Wq."""
    D = params["embedding"].shape[1]
    hd = D // n_heads
    C = params["fc_w"].shape[0]
    Cp = _round_up(C, 128)                             # lane-dense classifier output
    scale = 1.0 / math.sqrt(hd)

    def per_layer(lp):
        wqkv_t = lp["wqkv"].T                          # (D, 3D) = [Wq^T | Wk^T | Wv^T]
        wqkv_t = wqkv_t.at[:, :D].multiply(scale)      # fold 1/sqrt(hd) into Wq
        bqkv = lp["bqkv"].reshape(1, 3 * D)
        bqkv = bqkv.at[:, :D].multiply(scale)          # ... and into bq
        # TODO(synk): on v7x store wqkv/wo/w1/w2 in fp8 (e4m3) with per-tensor
        # scales to halve weight DMA + double-buffer footprint in 64 MiB VMEM.
        return dict(
            wqkv=wqkv_t.astype(jnp.bfloat16), bqkv=bqkv.astype(jnp.float32),
            wo=lp["wo"].T.astype(jnp.bfloat16), bo=lp["bo"].astype(jnp.float32),
            w1=lp["w1"].T.astype(jnp.bfloat16), b1=lp["b1"].astype(jnp.float32),
            w2=lp["w2"].T.astype(jnp.bfloat16), b2=lp["b2"].astype(jnp.float32),
            ln1w=lp["ln1w"], ln1b=lp["ln1b"], ln2w=lp["ln2w"], ln2b=lp["ln2b"],
        )

    per = [per_layer(lp) for lp in params["layers"]]
    stacked = {k: jnp.stack([p[k] for p in per], axis=0) for k in per[0]}

    fcw_t = jnp.pad(params["fc_w"].T, ((0, 0), (0, Cp - C))).astype(jnp.bfloat16)
    fcb = jnp.pad(params["fc_b"], ((0, 0), (0, Cp - C))).astype(jnp.float32)
    return stacked, fcw_t, fcb, Cp


def _derive_vmem_limit(S, D, F, H, Cp, ff_tile):
    """Explicit scoped-VMEM budget derived from the actual resident set."""
    bf16, f32 = 2, 4
    per_layer_w = ((D * 3 * D + D * D + 2 * D * F) * bf16
                   + (3 * D + 2 * D + F + 4 * D) * f32)
    resident = 2 * per_layer_w                         # double-buffered layer weights
    resident += 2 * S * D * f32                        # x block (double-buffered)
    resident += S * D * f32                            # activation scratch
    resident += D * Cp * bf16 + Cp * f32               # classifier weights (resident)
    resident += 2 * Cp * f32                           # output block
    # per-step intermediates: qkv, scores+probs, ctx/attn, ffn tile
    resident += (S * 3 * D + 2 * H * S * S + 2 * S * D + S * ff_tile) * f32
    limit = max(2 * resident, 32 << 20)                # 2x headroom for compiler temps
    # TODO(synk): on v7x cap ~56 MiB (64 MiB physical VMEM) and shrink S/ff tiles.
    return int(min(limit, 100 << 20))


# ---------------------------------------------------------------------------
# Forward pass (pallas_call plumbing)
# ---------------------------------------------------------------------------
def transformer_xl_forward(src, params, n_heads, *, ff_tile=512):
    B, S = src.shape
    D = params["embedding"].shape[1]
    H = n_heads
    L = len(params["layers"])
    F = params["layers"][0]["w1"].shape[0]
    C = params["fc_w"].shape[0]

    # plain-JAX glue: embedding gather + learned positional term; eval-mode
    # dropout is identity; PyTorch's (B,S,D)->(S,B,D) permute is layout-only
    # and is absorbed by the per-batch grid axis.
    x = jnp.take(params["embedding"], src, axis=0) + params["pos"][:, :S, :]
    x = x.astype(jnp.float32)                          # (B, S, D)

    stacked, fcw_t, fcb, Cp = pack_params(params, n_heads)
    ff_tile = min(ff_tile, F)

    xmap = lambda b, l: (b, 0, 0)                      # per batch tile
    lmap = lambda b, l: (l, 0, 0)                      # per layer (prefetched)
    cmap = lambda b, l: (0, 0)                         # resident constants

    # TODO(synk): on v5e (weight-DMA-bound at small token counts) process more
    # tokens per step (batch tile > 1) or use pipeline_mode=pl.Buffered(3) on
    # the w1/w2 specs; keep the default double-buffering on v7x (scarce VMEM).
    in_specs = [
        pl.BlockSpec((1, S, D), xmap),                 # embeddings (batch tile)
        pl.BlockSpec((1, D, 3 * D), lmap),             # wqkv  (fused, pre-T, bf16)
        pl.BlockSpec((1, 1, 3 * D), lmap),             # bqkv  (scale folded)
        pl.BlockSpec((1, D, D), lmap),                 # wo    (pre-T)
        pl.BlockSpec((1, 1, D), lmap),                 # bo
        pl.BlockSpec((1, D, F), lmap),                 # w1    (pre-T)
        pl.BlockSpec((1, 1, F), lmap),                 # b1
        pl.BlockSpec((1, F, D), lmap),                 # w2    (pre-T)
        pl.BlockSpec((1, 1, D), lmap),                 # b2
        pl.BlockSpec((1, 1, D), lmap),                 # ln1w
        pl.BlockSpec((1, 1, D), lmap),                 # ln1b
        pl.BlockSpec((1, 1, D), lmap),                 # ln2w
        pl.BlockSpec((1, 1, D), lmap),                 # ln2b
        pl.BlockSpec((D, Cp), cmap),                   # fc_w (pre-T, padded, bf16)
        pl.BlockSpec((1, Cp), cmap),                   # fc_b (padded)
    ]

    logits_padded = pl.pallas_call(
        functools.partial(txl_layer_kernel, n_heads=H, ff_tile=ff_tile),
        out_shape=jax.ShapeDtypeStruct((B, 1, Cp), jnp.float32),
        grid=(B, L),                                   # batch outer, layers inner
        in_specs=in_specs,
        out_specs=pl.BlockSpec((1, 1, Cp), xmap),      # lane-dense 128-wide output
        scratch_shapes=[pltpu.VMEM((S, D), jnp.float32)],   # resident activations
        compiler_params=pltpu.CompilerParams(
            # batch axis parallel (v7x 2 TCs); layer axis carries the scratch.
            dimension_semantics=("parallel", "arbitrary"),
            vmem_limit_bytes=_derive_vmem_limit(S, D, F, H, Cp, ff_tile)),
    )(x,
      stacked["wqkv"], stacked["bqkv"], stacked["wo"], stacked["bo"],
      stacked["w1"], stacked["b1"], stacked["w2"], stacked["b2"],
      stacked["ln1w"], stacked["ln1b"], stacked["ln2w"], stacked["ln2b"],
      fcw_t, fcb)

    return logits_padded[:, 0, :C]


# ---------------------------------------------------------------------------
# Pure-JAX reference (mirrors the kernel's bf16-operand / f32-accumulate MXU
# usage so the comparison is tight; LayerNorm/softmax in f32).
# ---------------------------------------------------------------------------
def reference_forward(src, params, n_heads):
    B, S = src.shape
    D = params["embedding"].shape[1]
    hd = D // n_heads

    def mm(a, b):
        return jnp.dot(a.astype(jnp.bfloat16), b.astype(jnp.bfloat16),
                       preferred_element_type=jnp.float32)

    x = jnp.take(params["embedding"], src, axis=0) + params["pos"][:, :S, :]
    x = x.astype(jnp.float32)
    for lp in params["layers"]:
        x2 = x.reshape(B * S, D)
        qkv = mm(x2, lp["wqkv"].T) + lp["bqkv"]
        q, k, v = qkv[:, :D], qkv[:, D:2 * D], qkv[:, 2 * D:]

        def split_heads(t):
            return t.reshape(B, S, n_heads, hd).transpose(0, 2, 1, 3)

        q = split_heads(q) / math.sqrt(hd)
        k = split_heads(k)
        v = split_heads(v)
        s = jnp.einsum("bhqd,bhkd->bhqk", q.astype(jnp.bfloat16),
                       k.astype(jnp.bfloat16), preferred_element_type=jnp.float32)
        p = jax.nn.softmax(s, axis=-1)
        ctx = jnp.einsum("bhqk,bhkd->bhqd", p.astype(jnp.bfloat16),
                         v.astype(jnp.bfloat16), preferred_element_type=jnp.float32)
        ctx = ctx.transpose(0, 2, 1, 3).reshape(B * S, D)
        attn = mm(ctx, lp["wo"].T) + lp["bo"]

        x2 = x2 + attn
        mu = x2.mean(-1, keepdims=True)
        var = ((x2 - mu) ** 2).mean(-1, keepdims=True)
        x2 = (x2 - mu) * jax.lax.rsqrt(var + 1e-5) * lp["ln1w"] + lp["ln1b"]

        h1 = jax.nn.relu(mm(x2, lp["w1"].T) + lp["b1"])
        ff = mm(h1, lp["w2"].T) + lp["b2"]
        x2 = x2 + ff
        mu = x2.mean(-1, keepdims=True)
        var = ((x2 - mu) ** 2).mean(-1, keepdims=True)
        x2 = (x2 - mu) * jax.lax.rsqrt(var + 1e-5) * lp["ln2w"] + lp["ln2b"]
        x = x2.reshape(B, S, D)

    pooled = x.mean(axis=1)
    return mm(pooled, params["fc_w"].T) + params["fc_b"]


# ---------------------------------------------------------------------------
# Deterministic parameter init (PyTorch layouts)
# ---------------------------------------------------------------------------
def init_params(key, vocab_size, d_model, n_heads, d_ff, num_layers,
                num_classes, max_len):
    keys = iter(jax.random.split(key, 8 + 8 * num_layers))

    def rnd(shape, scale=0.05):
        return jax.random.normal(next(keys), shape, dtype=jnp.float32) * scale

    emb = rnd((vocab_size, d_model))
    emb = emb.at[0].set(0.0)                           # padding_idx=0
    params = {
        "embedding": emb,
        "pos": rnd((1, max_len, d_model)),             # nn.Parameter
        "fc_w": rnd((num_classes, d_model)),
        "fc_b": jnp.zeros((1, num_classes), jnp.float32),
        "layers": [],
    }
    for _ in range(num_layers):
        lp = {
            "wqkv": rnd((3 * d_model, d_model)),       # in_proj_weight
            "bqkv": jnp.zeros((1, 3 * d_model), jnp.float32),
            "wo": rnd((d_model, d_model)),             # out_proj
            "bo": jnp.zeros((1, d_model), jnp.float32),
            "w1": rnd((d_ff, d_model)),
            "b1": jnp.zeros((1, d_ff), jnp.float32),
            "w2": rnd((d_model, d_ff)),
            "b2": jnp.zeros((1, d_model), jnp.float32),
            "ln1w": jnp.ones((1, d_model), jnp.float32),
            "ln1b": jnp.zeros((1, d_model), jnp.float32),
            "ln2w": jnp.ones((1, d_model), jnp.float32),
            "ln2b": jnp.zeros((1, d_model), jnp.float32),
        }
        params["layers"].append(lp)
    return params


# ---------------------------------------------------------------------------
if __name__ == "__main__":
    vocab_size, d_model, n_heads, d_ff = 50, 32, 4, 64
    num_layers, num_classes, max_len = 2, 5, 16
    B, S = 2, 8

    key = jax.random.PRNGKey(0)
    pkey, dkey = jax.random.split(key)
    params = init_params(pkey, vocab_size, d_model, n_heads, d_ff,
                         num_layers, num_classes, max_len)
    src = jax.random.randint(dkey, (B, S), 0, vocab_size, dtype=jnp.int32)

    out = jax.block_until_ready(transformer_xl_forward(src, params, n_heads))
    ref = jax.block_until_ready(reference_forward(src, params, n_heads))

    assert out.shape == (B, num_classes)
    # tolerance accounts for bf16 MXU operands, the scale folded into bf16 Wq,
    # and the approximate EUP reciprocal in softmax
    assert jnp.allclose(out, ref, atol=1e-2, rtol=1e-2), (
        "mismatch vs reference, max |diff| = "
        f"{float(jnp.max(jnp.abs(out - ref)))}")

    print("KERNEL_OK")
</pallas_src>

<mosaic_0001>
module attributes {stable_mosaic.version = 11 : i64} {
  func.func @txl_layer_kernel(%arg0: i32, %arg1: i32, %arg2: memref<1x8x32xf32, #tpu.memory_space<vmem>>, %arg3: memref<1x32x96xbf16, #tpu.memory_space<vmem>>, %arg4: memref<1x1x96xf32, #tpu.memory_space<vmem>>, %arg5: memref<1x32x32xbf16, #tpu.memory_space<vmem>>, %arg6: memref<1x1x32xf32, #tpu.memory_space<vmem>>, %arg7: memref<1x32x64xbf16, #tpu.memory_space<vmem>>, %arg8: memref<1x1x64xf32, #tpu.memory_space<vmem>>, %arg9: memref<1x64x32xbf16, #tpu.memory_space<vmem>>, %arg10: memref<1x1x32xf32, #tpu.memory_space<vmem>>, %arg11: memref<1x1x32xf32, #tpu.memory_space<vmem>>, %arg12: memref<1x1x32xf32, #tpu.memory_space<vmem>>, %arg13: memref<1x1x32xf32, #tpu.memory_space<vmem>>, %arg14: memref<1x1x32xf32, #tpu.memory_space<vmem>>, %arg15: memref<32x128xbf16, #tpu.memory_space<vmem>>, %arg16: memref<1x128xf32, #tpu.memory_space<vmem>>, %arg17: memref<1x1x128xf32, #tpu.memory_space<vmem>>, %arg18: memref<8x32xf32, #tpu.memory_space<vmem>>) attributes {dimension_semantics = [#tpu.dimension_semantics<parallel>, #tpu.dimension_semantics<arbitrary>], iteration_bounds = array<i64: 2, 2>, scalar_prefetch = 0 : i64, scratch_operands = 1 : i64, tpu.core_type = #tpu.core_type<tc>, window_params = [{transform_indices = @transform_0, window_bounds = array<i64: 1, 8, 32>}, {transform_indices = @transform_1, window_bounds = array<i64: 1, 32, 96>}, {transform_indices = @transform_2, window_bounds = array<i64: 1, 1, 96>}, {transform_indices = @transform_3, window_bounds = array<i64: 1, 32, 32>}, {transform_indices = @transform_4, window_bounds = array<i64: 1, 1, 32>}, {transform_indices = @transform_5, window_bounds = array<i64: 1, 32, 64>}, {transform_indices = @transform_6, window_bounds = array<i64: 1, 1, 64>}, {transform_indices = @transform_7, window_bounds = array<i64: 1, 64, 32>}, {transform_indices = @transform_8, window_bounds = array<i64: 1, 1, 32>}, {transform_indices = @transform_9, window_bounds = array<i64: 1, 1, 32>}, {transform_indices = @transform_10, window_bounds = array<i64: 1, 1, 32>}, {transform_indices = @transform_11, window_bounds = array<i64: 1, 1, 32>}, {transform_indices = @transform_12, window_bounds = array<i64: 1, 1, 32>}, {pipeline_mode = #tpu.pipeline_mode<synchronous>, transform_indices = @transform_13, window_bounds = array<i64: 32, 128>}, {pipeline_mode = #tpu.pipeline_mode<synchronous>, transform_indices = @transform_14, window_bounds = array<i64: 1, 128>}, {transform_indices = @transform_15, window_bounds = array<i64: 1, 1, 128>}]} {
    %c0_i32 = arith.constant 0 : i32
    %0 = arith.cmpi eq, %arg1, %c0_i32 : i32
    %1 = arith.extui %0 : i1 to i32
    %c0_i32_0 = arith.constant 0 : i32
    %2 = arith.cmpi ne, %1, %c0_i32_0 : i32
    scf.if %2 {
      %c0_59 = arith.constant 0 : index
      %c0_60 = arith.constant 0 : index
      %c0_61 = arith.constant 0 : index
      %123 = vector.load %arg2[%c0_59, %c0_60, %c0_61] : memref<1x8x32xf32, #tpu.memory_space<vmem>>, vector<1x8x32xf32>
      %124 = vector.shape_cast %123 : vector<1x8x32xf32> to vector<8x32xf32>
      %c0_62 = arith.constant 0 : index
      %c0_63 = arith.constant 0 : index
      %125 = vector.load %arg18[%c0_62, %c0_63] : memref<8x32xf32, #tpu.memory_space<vmem>>, vector<8x32xf32>
      tpu.vector_store %arg18[%c0_62, %c0_63], %124 {strides = array<i32>} : memref<8x32xf32, #tpu.memory_space<vmem>>, vector<8x32xf32>,
    } else {
    }
    %c0 = arith.constant 0 : index
    %c0_1 = arith.constant 0 : index
    %3 = vector.load %arg18[%c0, %c0_1] : memref<8x32xf32, #tpu.memory_space<vmem>>, vector<8x32xf32>
    %4 = arith.truncf %3 : vector<8x32xf32> to vector<8x32xbf16>
    %c0_2 = arith.constant 0 : index
    %c0_3 = arith.constant 0 : index
    %c0_4 = arith.constant 0 : index
    %5 = vector.load %arg3[%c0_2, %c0_3, %c0_4] : memref<1x32x96xbf16, #tpu.memory_space<vmem>>, vector<1x32x96xbf16>
    %6 = vector.shape_cast %5 : vector<1x32x96xbf16> to vector<32x96xbf16>
    %cst = arith.constant dense<0.000000e+00> : vector<8x96xf32>
    %7 = tpu.matmul %4, %6, %cst {dimension_numbers = #tpu.dot_dimension_numbers<[1], [0], [0], [1], [0, 0, 1, 1], [], []>} : vector<8x32xbf16>, vector<32x96xbf16>, vector<8x96xf32> -> vector<8x96xf32>
    %c0_5 = arith.constant 0 : index
    %c0_6 = arith.constant 0 : index
    %c0_7 = arith.constant 0 : index
    %8 = vector.load %arg4[%c0_5, %c0_6, %c0_7] : memref<1x1x96xf32, #tpu.memory_space<vmem>>, vector<1x1x96xf32>
    %9 = vector.shape_cast %8 : vector<1x1x96xf32> to vector<1x96xf32>
    %10 = vector.broadcast %9 : vector<1x96xf32> to vector<8x96xf32>
    %11 = arith.addf %7, %10 : vector<8x96xf32>
    %12 = vector.extract_strided_slice %11 {offsets = [0, 0], sizes = [8, 32], strides = [1, 1]} : vector<8x96xf32> to vector<8x32xf32>
    %13 = vector.shape_cast %12 : vector<8x32xf32> to vector<8x4x8xf32>
    %14 = tpu.transpose %13, [1, 0, 2] : vector<8x4x8xf32> -> vector<4x8x8xf32>
    %15 = vector.extract_strided_slice %11 {offsets = [0, 32], sizes = [8, 32], strides = [1, 1]} : vector<8x96xf32> to vector<8x32xf32>
    %16 = vector.shape_cast %15 : vector<8x32xf32> to vector<8x4x8xf32>
    %17 = tpu.transpose %16, [1, 0, 2] : vector<8x4x8xf32> -> vector<4x8x8xf32>
    %18 = vector.extract_strided_slice %11 {offsets = [0, 64], sizes = [8, 32], strides = [1, 1]} : vector<8x96xf32> to vector<8x32xf32>
    %19 = vector.shape_cast %18 : vector<8x32xf32> to vector<8x4x8xf32>
    %20 = tpu.transpose %19, [1, 0, 2] : vector<8x4x8xf32> -> vector<4x8x8xf32>
    %21 = arith.truncf %14 : vector<4x8x8xf32> to vector<4x8x8xbf16>
    %22 = arith.truncf %17 : vector<4x8x8xf32> to vector<4x8x8xbf16>
    "tpu.trace_start"() <{level = 10 : i32, message = "hqd,hkd->hqk"}> : () -> ()
    %cst_8 = arith.constant dense<0.000000e+00> : vector<4x8x8xf32>
    %23 = tpu.matmul %21, %22, %cst_8 {dimension_numbers = #tpu.dot_dimension_numbers<[2], [2], [1], [1], [0, 0, 0, 1, 1, 1], [0], [0]>} : vector<4x8x8xbf16>, vector<4x8x8xbf16>, vector<4x8x8xf32> -> vector<4x8x8xf32>
    "tpu.trace_stop"() : () -> ()
    %cst_9 = arith.constant dense<0xFF800000> : vector<4x8xf32>
    %24 = vector.multi_reduction <maximumf>, %23, %cst_9 [2] : vector<4x8x8xf32> to vector<4x8xf32>
    %25 = vector.shape_cast %24 : vector<4x8xf32> to vector<4x8x1xf32>
    %26 = vector.broadcast %25 : vector<4x8x1xf32> to vector<4x8x8xf32>
    %27 = arith.subf %23, %26 : vector<4x8x8xf32>
    %28 = math.exp %27 : vector<4x8x8xf32>
    %cst_10 = arith.constant dense<0.000000e+00> : vector<4x8xf32>
    %29 = vector.multi_reduction <add>, %28, %cst_10 [2] : vector<4x8x8xf32> to vector<4x8xf32>
    %30 = vector.shape_cast %29 : vector<4x8xf32> to vector<4x8x1xf32>
    %31 = tpu.reciprocal %30 {approx = true} : vector<4x8x1xf32> -> vector<4x8x1xf32>
    %32 = vector.broadcast %31 : vector<4x8x1xf32> to vector<4x8x8xf32>
    %33 = arith.mulf %28, %32 : vector<4x8x8xf32>
    %34 = arith.truncf %33 : vector<4x8x8xf32> to vector<4x8x8xbf16>
    %35 = arith.truncf %20 : vector<4x8x8xf32> to vector<4x8x8xbf16>
    "tpu.trace_start"() <{level = 10 : i32, message = "hqk,hkd->hqd"}> : () -> ()
    %cst_11 = arith.constant dense<0.000000e+00> : vector<4x8x8xf32>
    %36 = tpu.matmul %34, %35, %cst_11 {dimension_numbers = #tpu.dot_dimension_numbers<[2], [1], [1], [2], [0, 0, 0, 1, 1, 2], [0], [0]>} : vector<4x8x8xbf16>, vector<4x8x8xbf16>, vector<4x8x8xf32> -> vector<4x8x8xf32>
    "tpu.trace_stop"() : () -> ()
    %37 = tpu.transpose %36, [1, 0, 2] : vector<4x8x8xf32> -> vector<8x4x8xf32>
    %38 = vector.shape_cast %37 : vector<8x4x8xf32> to vector<8x32xf32>
    %39 = arith.truncf %38 : vector<8x32xf32> to vector<8x32xbf16>
    %c0_12 = arith.constant 0 : index
    %c0_13 = arith.constant 0 : index
    %c0_14 = arith.constant 0 : index
    %40 = vector.load %arg5[%c0_12, %c0_13, %c0_14] : memref<1x32x32xbf16, #tpu.memory_space<vmem>>, vector<1x32x32xbf16>
    %41 = vector.shape_cast %40 : vector<1x32x32xbf16> to vector<32x32xbf16>
    %cst_15 = arith.constant dense<0.000000e+00> : vector<8x32xf32>
    %42 = tpu.matmul %39, %41, %cst_15 {dimension_numbers = #tpu.dot_dimension_numbers<[1], [0], [0], [1], [0, 0, 1, 1], [], []>} : vector<8x32xbf16>, vector<32x32xbf16>, vector<8x32xf32> -> vector<8x32xf32>
    %c0_16 = arith.constant 0 : index
    %c0_17 = arith.constant 0 : index
    %c0_18 = arith.constant 0 : index
    %43 = vector.load %arg6[%c0_16, %c0_17, %c0_18] : memref<1x1x32xf32, #tpu.memory_space<vmem>>, vector<1x1x32xf32>
    %44 = vector.shape_cast %43 : vector<1x1x32xf32> to vector<1x32xf32>
    %45 = vector.broadcast %44 : vector<1x32xf32> to vector<8x32xf32>
    %46 = arith.addf %42, %45 : vector<8x32xf32>
    %47 = arith.addf %3, %46 : vector<8x32xf32>
    %cst_19 = arith.constant dense<0.000000e+00> : vector<8xf32>
    %48 = vector.multi_reduction <add>, %47, %cst_19 [1] : vector<8x32xf32> to vector<8xf32>
    %49 = vector.shape_cast %48 : vector<8xf32> to vector<8x1xf32>
    %cst_20 = arith.constant 3.200000e+01 : f32
    %50 = vector.broadcast %cst_20 : f32 to vector<8x1xf32>
    %51 = arith.divf %49, %50 : vector<8x1xf32>
    %52 = vector.broadcast %51 : vector<8x1xf32> to vector<8x32xf32>
    %53 = arith.subf %47, %52 : vector<8x32xf32>
    %54 = arith.mulf %53, %53 : vector<8x32xf32>
    %cst_21 = arith.constant dense<0.000000e+00> : vector<8xf32>
    %55 = vector.multi_reduction <add>, %54, %cst_21 [1] : vector<8x32xf32> to vector<8xf32>
    %56 = vector.shape_cast %55 : vector<8xf32> to vector<8x1xf32>
    %cst_22 = arith.constant 3.200000e+01 : f32
    %57 = vector.broadcast %cst_22 : f32 to vector<8x1xf32>
    %58 = arith.divf %56, %57 : vector<8x1xf32>
    %59 = vector.broadcast %51 : vector<8x1xf32> to vector<8x32xf32>
    %60 = arith.subf %47, %59 : vector<8x32xf32>
    %cst_23 = arith.constant 9.99999974E-6 : f32
    %61 = vector.broadcast %cst_23 : f32 to vector<8x1xf32>
    %62 = arith.addf %58, %61 : vector<8x1xf32>
    %63 = math.rsqrt %62 : vector<8x1xf32>
    %64 = vector.broadcast %63 : vector<8x1xf32> to vector<8x32xf32>
    %65 = arith.mulf %60, %64 : vector<8x32xf32>
    %c0_24 = arith.constant 0 : index
    %c0_25 = arith.constant 0 : index
    %c0_26 = arith.constant 0 : index
    %66 = vector.load %arg11[%c0_24, %c0_25, %c0_26] : memref<1x1x32xf32, #tpu.memory_space<vmem>>, vector<1x1x32xf32>
    %67 = vector.shape_cast %66 : vector<1x1x32xf32> to vector<1x32xf32>
    %68 = vector.broadcast %67 : vector<1x32xf32> to vector<8x32xf32>
    %69 = arith.mulf %65, %68 : vector<8x32xf32>
    %c0_27 = arith.constant 0 : index
    %c0_28 = arith.constant 0 : index
    %c0_29 = arith.constant 0 : index
    %70 = vector.load %arg12[%c0_27, %c0_28, %c0_29] : memref<1x1x32xf32, #tpu.memory_space<vmem>>, vector<1x1x32xf32>
    %71 = vector.shape_cast %70 : vector<1x1x32xf32> to vector<1x32xf32>
    %72 = vector.broadcast %71 : vector<1x32xf32> to vector<8x32xf32>
    %73 = arith.addf %69, %72 : vector<8x32xf32>
    %74 = arith.truncf %73 : vector<8x32xf32> to vector<8x32xbf16>
    %c0_30 = arith.constant 0 : index
    %c0_31 = arith.constant 0 : index
    %c0_32 = arith.constant 0 : index
    %75 = vector.load %arg7[%c0_30, %c0_31, %c0_32] : memref<1x32x64xbf16, #tpu.memory_space<vmem>>, vector<1x32x64xbf16>
    %76 = vector.shape_cast %75 : vector<1x32x64xbf16> to vector<32x64xbf16>
    %cst_33 = arith.constant dense<0.000000e+00> : vector<8x64xf32>
    %77 = tpu.matmul %74, %76, %cst_33 {dimension_numbers = #tpu.dot_dimension_numbers<[1], [0], [0], [1], [0, 0, 1, 1], [], []>} : vector<8x32xbf16>, vector<32x64xbf16>, vector<8x64xf32> -> vector<8x64xf32>
    %c0_34 = arith.constant 0 : index
    %c0_35 = arith.constant 0 : index
    %c0_36 = arith.constant 0 : index
    %78 = vector.load %arg8[%c0_34, %c0_35, %c0_36] : memref<1x1x64xf32, #tpu.memory_space<vmem>>, vector<1x1x64xf32>
    %79 = vector.shape_cast %78 : vector<1x1x64xf32> to vector<1x64xf32>
    %80 = vector.broadcast %79 : vector<1x64xf32> to vector<8x64xf32>
    %81 = arith.addf %77, %80 : vector<8x64xf32>
    %cst_37 = arith.constant 0.000000e+00 : f32
    %82 = vector.broadcast %cst_37 : f32 to vector<8x64xf32>
    %83 = arith.maximumf %81, %82 : vector<8x64xf32>
    %84 = arith.truncf %83 : vector<8x64xf32> to vector<8x64xbf16>
    %c0_38 = arith.constant 0 : index
    %c0_39 = arith.constant 0 : index
    %c0_40 = arith.constant 0 : index
    %85 = vector.load %arg9[%c0_38, %c0_39, %c0_40] : memref<1x64x32xbf16, #tpu.memory_space<vmem>>, vector<1x64x32xbf16>
    %86 = vector.shape_cast %85 : vector<1x64x32xbf16> to vector<64x32xbf16>
    %cst_41 = arith.constant dense<0.000000e+00> : vector<8x32xf32>
    %87 = tpu.matmul %84, %86, %cst_41 {dimension_numbers = #tpu.dot_dimension_numbers<[1], [0], [0], [1], [0, 0, 1, 1], [], []>} : vector<8x64xbf16>, vector<64x32xbf16>, vector<8x32xf32> -> vector<8x32xf32>
    %c0_42 = arith.constant 0 : index
    %c0_43 = arith.constant 0 : index
    %c0_44 = arith.constant 0 : index
    %88 = vector.load %arg10[%c0_42, %c0_43, %c0_44] : memref<1x1x32xf32, #tpu.memory_space<vmem>>, vector<1x1x32xf32>
    %89 = vector.shape_cast %88 : vector<1x1x32xf32> to vector<1x32xf32>
    %90 = vector.broadcast %89 : vector<1x32xf32> to vector<8x32xf32>
    %91 = arith.addf %87, %90 : vector<8x32xf32>
    %92 = arith.addf %73, %91 : vector<8x32xf32>
    %cst_45 = arith.constant dense<0.000000e+00> : vector<8xf32>
    %93 = vector.multi_reduction <add>, %92, %cst_45 [1] : vector<8x32xf32> to vector<8xf32>
    %94 = vector.shape_cast %93 : vector<8xf32> to vector<8x1xf32>
    %cst_46 = arith.constant 3.200000e+01 : f32
    %95 = vector.broadcast %cst_46 : f32 to vector<8x1xf32>
    %96 = arith.divf %94, %95 : vector<8x1xf32>
    %97 = vector.broadcast %96 : vector<8x1xf32> to vector<8x32xf32>
    %98 = arith.subf %92, %97 : vector<8x32xf32>
    %99 = arith.mulf %98, %98 : vector<8x32xf32>
    %cst_47 = arith.constant dense<0.000000e+00> : vector<8xf32>
    %100 = vector.multi_reduction <add>, %99, %cst_47 [1] : vector<8x32xf32> to vector<8xf32>
    %101 = vector.shape_cast %100 : vector<8xf32> to vector<8x1xf32>
    %cst_48 = arith.constant 3.200000e+01 : f32
    %102 = vector.broadcast %cst_48 : f32 to vector<8x1xf32>
    %103 = arith.divf %101, %102 : vector<8x1xf32>
    %104 = vector.broadcast %96 : vector<8x1xf32> to vector<8x32xf32>
    %105 = arith.subf %92, %104 : vector<8x32xf32>
    %cst_49 = arith.constant 9.99999974E-6 : f32
    %106 = vector.broadcast %cst_49 : f32 to vector<8x1xf32>
    %107 = arith.addf %103, %106 : vector<8x1xf32>
    %108 = math.rsqrt %107 : vector<8x1xf32>
    %109 = vector.broadcast %108 : vector<8x1xf32> to vector<8x32xf32>
    %110 = arith.mulf %105, %109 : vector<8x32xf32>
    %c0_50 = arith.constant 0 : index
    %c0_51 = arith.constant 0 : index
    %c0_52 = arith.constant 0 : index
    %111 = vector.load %arg13[%c0_50, %c0_51, %c0_52] : memref<1x1x32xf32, #tpu.memory_space<vmem>>, vector<1x1x32xf32>
    %112 = vector.shape_cast %111 : vector<1x1x32xf32> to vector<1x32xf32>
    %113 = vector.broadcast %112 : vector<1x32xf32> to vector<8x32xf32>
    %114 = arith.mulf %110, %113 : vector<8x32xf32>
    %c0_53 = arith.constant 0 : index
    %c0_54 = arith.constant 0 : index
    %c0_55 = arith.constant 0 : index
    %115 = vector.load %arg14[%c0_53, %c0_54, %c0_55] : memref<1x1x32xf32, #tpu.memory_space<vmem>>, vector<1x1x32xf32>
    %116 = vector.shape_cast %115 : vector<1x1x32xf32> to vector<1x32xf32>
    %117 = vector.broadcast %116 : vector<1x32xf32> to vector<8x32xf32>
    %118 = arith.addf %114, %117 : vector<8x32xf32>
    %c0_56 = arith.constant 0 : index
    %c0_57 = arith.constant 0 : index
    %119 = vector.load %arg18[%c0_56, %c0_57] : memref<8x32xf32, #tpu.memory_space<vmem>>, vector<8x32xf32>
    tpu.vector_store %arg18[%c0_56, %c0_57], %118 {strides = array<i32>} : memref<8x32xf32, #tpu.memory_space<vmem>>, vector<8x32xf32>,
    %c1_i32 = arith.constant 1 : i32
    %120 = arith.cmpi eq, %arg1, %c1_i32 : i32
    %121 = arith.extui %120 : i1 to i32
    %c0_i32_58 = arith.constant 0 : i32
    %122 = arith.cmpi ne, %121, %c0_i32_58 : i32
    scf.if %122 {
      %cst_59 = arith.constant dense<0.000000e+00> : vector<32xf32>
      %123 = vector.multi_reduction <add>, %118, %cst_59 [0] : vector<8x32xf32> to vector<32xf32>
      %124 = vector.shape_cast %123 : vector<32xf32> to vector<1x32xf32>
      %cst_60 = arith.constant 8.000000e+00 : f32
      %125 = vector.broadcast %cst_60 : f32 to vector<1x32xf32>
      %126 = arith.divf %124, %125 : vector<1x32xf32>
      %127 = arith.truncf %126 : vector<1x32xf32> to vector<1x32xbf16>
      %c0_61 = arith.constant 0 : index
      %c0_62 = arith.constant 0 : index
      %128 = vector.load %arg15[%c0_61, %c0_62] : memref<32x128xbf16, #tpu.memory_space<vmem>>, vector<32x128xbf16>
      %cst_63 = arith.constant dense<0.000000e+00> : vector<1x128xf32>
      %129 = tpu.matmul %127, %128, %cst_63 {dimension_numbers = #tpu.dot_dimension_numbers<[1], [0], [0], [1], [0, 0, 1, 1], [], []>} : vector<1x32xbf16>, vector<32x128xbf16>, vector<1x128xf32> -> vector<1x128xf32>
      %c0_64 = arith.constant 0 : index
      %c0_65 = arith.constant 0 : index
      %130 = vector.load %arg16[%c0_64, %c0_65] : memref<1x128xf32, #tpu.memory_space<vmem>>, vector<1x128xf32>
      %131 = arith.addf %129, %130 : vector<1x128xf32>
      %c0_66 = arith.constant 0 : index
      %c0_67 = arith.constant 0 : index
      %c0_68 = arith.constant 0 : index
      %132 = vector.load %arg17[%c0_66, %c0_67, %c0_68] : memref<1x1x128xf32, #tpu.memory_space<vmem>>, vector<1x1x128xf32>
      %133 = vector.shape_cast %132 : vector<1x1x128xf32> to vector<1x128xf32>
      %134 = vector.shape_cast %131 : vector<1x128xf32> to vector<1x1x128xf32>
      tpu.vector_store %arg17[%c0_66, %c0_67, %c0_68], %134 {strides = array<i32>} : memref<1x1x128xf32, #tpu.memory_space<vmem>>, vector<1x1x128xf32>,
    } else {
    }
    return
  }
  func.func @transform_0(%arg0: i32, %arg1: i32) -> (i32, i32, i32) {
    %c0_i32 = arith.constant 0 : i32
    %c0_i32_0 = arith.constant 0 : i32
    %c0_i32_1 = arith.constant 0 : i32
    return %arg0, %c0_i32, %c0_i32_0 : i32, i32, i32
  }
  func.func @transform_1(%arg0: i32, %arg1: i32) -> (i32, i32, i32) {
    %c0_i32 = arith.constant 0 : i32
    %c0_i32_0 = arith.constant 0 : i32
    %c0_i32_1 = arith.constant 0 : i32
    return %arg1, %c0_i32, %c0_i32_0 : i32, i32, i32
  }
  func.func @transform_2(%arg0: i32, %arg1: i32) -> (i32, i32, i32) {
    %c0_i32 = arith.constant 0 : i32
    %c0_i32_0 = arith.constant 0 : i32
    %c0_i32_1 = arith.constant 0 : i32
    return %arg1, %c0_i32, %c0_i32_0 : i32, i32, i32
  }
  func.func @transform_3(%arg0: i32, %arg1: i32) -> (i32, i32, i32) {
    %c0_i32 = arith.constant 0 : i32
    %c0_i32_0 = arith.constant 0 : i32
    %c0_i32_1 = arith.constant 0 : i32
    return %arg1, %c0_i32, %c0_i32_0 : i32, i32, i32
  }
  func.func @transform_4(%arg0: i32, %arg1: i32) -> (i32, i32, i32) {
    %c0_i32 = arith.constant 0 : i32
    %c0_i32_0 = arith.constant 0 : i32
    %c0_i32_1 = arith.constant 0 : i32
    return %arg1, %c0_i32, %c0_i32_0 : i32, i32, i32
  }
  func.func @transform_5(%arg0: i32, %arg1: i32) -> (i32, i32, i32) {
    %c0_i32 = arith.constant 0 : i32
    %c0_i32_0 = arith.constant 0 : i32
    %c0_i32_1 = arith.constant 0 : i32
    return %arg1, %c0_i32, %c0_i32_0 : i32, i32, i32
  }
  func.func @transform_6(%arg0: i32, %arg1: i32) -> (i32, i32, i32) {
    %c0_i32 = arith.constant 0 : i32
    %c0_i32_0 = arith.constant 0 : i32
    %c0_i32_1 = arith.constant 0 : i32
    return %arg1, %c0_i32, %c0_i32_0 : i32, i32, i32
  }
  func.func @transform_7(%arg0: i32, %arg1: i32) -> (i32, i32, i32) {
    %c0_i32 = arith.constant 0 : i32
    %c0_i32_0 = arith.constant 0 : i32
    %c0_i32_1 = arith.constant 0 : i32
    return %arg1, %c0_i32, %c0_i32_0 : i32, i32, i32
  }
  func.func @transform_8(%arg0: i32, %arg1: i32) -> (i32, i32, i32) {
    %c0_i32 = arith.constant 0 : i32
    %c0_i32_0 = arith.constant 0 : i32
    %c0_i32_1 = arith.constant 0 : i32
    return %arg1, %c0_i32, %c0_i32_0 : i32, i32, i32
  }
  func.func @transform_9(%arg0: i32, %arg1: i32) -> (i32, i32, i32) {
    %c0_i32 = arith.constant 0 : i32
    %c0_i32_0 = arith.constant 0 : i32
    %c0_i32_1 = arith.constant 0 : i32
    return %arg1, %c0_i32, %c0_i32_0 : i32, i32, i32
  }
  func.func @transform_10(%arg0: i32, %arg1: i32) -> (i32, i32, i32) {
    %c0_i32 = arith.constant 0 : i32
    %c0_i32_0 = arith.constant 0 : i32
    %c0_i32_1 = arith.constant 0 : i32
    return %arg1, %c0_i32, %c0_i32_0 : i32, i32, i32
  }
  func.func @transform_11(%arg0: i32, %arg1: i32) -> (i32, i32, i32) {
    %c0_i32 = arith.constant 0 : i32
    %c0_i32_0 = arith.constant 0 : i32
    %c0_i32_1 = arith.constant 0 : i32
    return %arg1, %c0_i32, %c0_i32_0 : i32, i32, i32
  }
  func.func @transform_12(%arg0: i32, %arg1: i32) -> (i32, i32, i32) {
    %c0_i32 = arith.constant 0 : i32
    %c0_i32_0 = arith.constant 0 : i32
    %c0_i32_1 = arith.constant 0 : i32
    return %arg1, %c0_i32, %c0_i32_0 : i32, i32, i32
  }
  func.func @transform_13(%arg0: i32, %arg1: i32) -> (i32, i32) {
    %c0_i32 = arith.constant 0 : i32
    %c0_i32_0 = arith.constant 0 : i32
    %c0_i32_1 = arith.constant 0 : i32
    return %c0_i32, %c0_i32_0 : i32, i32
  }
  func.func @transform_14(%arg0: i32, %arg1: i32) -> (i32, i32) {
    %c0_i32 = arith.constant 0 : i32
    %c0_i32_0 = arith.constant 0 : i32
    %c0_i32_1 = arith.constant 0 : i32
    return %c0_i32, %c0_i32_0 : i32, i32
  }
  func.func @transform_15(%arg0: i32, %arg1: i32) -> (i32, i32, i32) {
    %c0_i32 = arith.constant 0 : i32
    %c0_i32_0 = arith.constant 0 : i32
    %c0_i32_1 = arith.constant 0 : i32
    return %arg0, %c0_i32, %c0_i32_0 : i32, i32, i32
  }
}

</mosaic_0001>

<llo_original>
// kernel: tpu_custom_call.1
$region0: #{tpu_custom_call.1}
  #allocation0 [shape = 'u32[]', space=smem, size = 0x4, offset = 0x4, fixed_abs, tag = 'smem constant byte address 0x4 - core index']
  #allocation1 [shape = 'u32[144,128]{1,0:T(1,128)}', space=vmem, size = 0x12000, scoped, tag = 'internal scratch']
  #allocation2 [shape = 'f32[8,32]{1,0:T(8,128)}', space=vmem, size = 0x1000, scoped, tag = 'scratch operand']
  %s0 = inlined_call_operand.hbm [shape: f32[2,8,32], index: 0, kind: input, shape index: {}]
  %s1 = inlined_call_operand.vmem [shape: bf16[2,32,96], index: 1, kind: input, shape index: {}]
  %s2 = inlined_call_operand.vmem [shape: f32[2,1,96], index: 2, kind: input, shape index: {}]
  %s3 = inlined_call_operand.vmem [shape: bf16[2,32,32], index: 3, kind: input, shape index: {}]
  %s4 = inlined_call_operand.hbm [shape: f32[2,1,32], index: 4, kind: input, shape index: {}]
  %s5 = inlined_call_operand.vmem [shape: bf16[2,32,64], index: 5, kind: input, shape index: {}]
  %s6 = inlined_call_operand.vmem [shape: f32[2,1,64], index: 6, kind: input, shape index: {}]
  %s7 = inlined_call_operand.vmem [shape: bf16[2,64,32], index: 7, kind: input, shape index: {}]
  %s8 = inlined_call_operand.vmem [shape: f32[2,1,32], index: 8, kind: input, shape index: {}]
  %s9 = inlined_call_operand.vmem [shape: f32[2,1,32], index: 9, kind: input, shape index: {}]
  %s10 = inlined_call_operand.vmem [shape: f32[2,1,32], index: 10, kind: input, shape index: {}]
  %s11 = inlined_call_operand.vmem [shape: f32[2,1,32], index: 11, kind: input, shape index: {}]
  %s12 = inlined_call_operand.vmem [shape: f32[2,1,32], index: 12, kind: input, shape index: {}]
  %s13 = inlined_call_operand.vmem [shape: bf16[32,128], index: 13, kind: input, shape index: {}]
  %s14 = inlined_call_operand.vmem [shape: f32[1,128], index: 14, kind: input, shape index: {}]
  %s15 = inlined_call_operand.hbm [shape: f32[2,1,128], index: 15, kind: output, shape index: {}]
  %s16 = sld [smem:[#allocation0]]
  $region109: #{tpu_custom_call.1} parent=0
    _
  %s18 = ssub.s32 1, %s16
  %s19 = scalar_select 0, %s18, %s16
  $region1: #{tpu_custom_call.1} parent=0
    #allocation3 [shape = 'u8[8192]{0}', space=vmem, size = 0x2000, scoped, tag = 'input window, operand 0']
    #allocation4 [shape = 's32[2]{0}', space=sflag, size = 0x8, scoped, tag = 'scoped memory for tpu_custom_call.1']
    #allocation5 [shape = 's32[2]{0}', space=sflag, size = 0x8, scoped, tag = 'scoped memory for tpu_custom_call.1']
    #allocation6 [shape = 'u8[1024]{0}', space=vmem, size = 0x400, scoped, tag = 'input window, operand 4']
    #allocation7 [shape = 's32[2]{0}', space=sflag, size = 0x8, scoped, tag = 'scoped memory for tpu_custom_call.1']
    #allocation8 [shape = 'u8[1024]{0}', space=vmem, size = 0x400, scoped, tag = 'output window, operand 0']
    %20 = vsyncpa [#allocation4], 0
    %s21 = scalar_lea.sflag [#allocation4], 1
    %22 = vsyncpa %s21, 0
    %23 = vsyncpa [#allocation7], 0
    %s24 = scalar_lea.sflag [#allocation7], 1
    %25 = vsyncpa %s24, 0
    %26 = vsyncpa [#allocation5], 0
    %s27 = scalar_lea.sflag [#allocation5], 1
    %28 = vsyncpa %s27, 0
    loop: start=0, step=1, limit=6
    $region2: #{tpu_custom_call.1} parent=1 // loop_pre_header
      _
    $region3: #{tpu_custom_call.1} parent=1 // loop_header
      %s30 = sphi 0, %s34
      %p31 = scmp.ge.s32.totalorder %s30, 6
      %s37 = sphi 0, %s49
      %s38 = sphi 0, %s45
      %s39 = sphi 0, %s37
      %s40 = sphi 0, %s38
      %s41 = sphi 0, %s39
      %s42 = sphi 0, %s40
      %s52 = sphi 0, %s54
      %s55 = sphi 0, %s52
      %s56 = sphi 0, %s55
      %s72 = sphi 0, %s56
      %s78 = sphi 0, %s80
      %s81 = sphi 0, %s78
      %s82 = sphi 0, %s81
      %s98 = sphi 0, %s82
      %s104 = sphi 0, %s106
      %s107 = sphi 0, %s104
      %s108 = sphi 0, %s107
      %s124 = sphi 0, %s108
      %s130 = sphi 0, %s132
      %s133 = sphi 0, %s130
      %s134 = sphi 0, %s133
      %s150 = sphi 0, %s134
      %s156 = sphi 0, %s158
      %s159 = sphi 0, %s156
      %s160 = sphi 0, %s159
      %s176 = sphi 0, %s160
      %s182 = sphi 0, %s184
      %s185 = sphi 0, %s182
      %s186 = sphi 0, %s185
      %s202 = sphi 0, %s186
      %s208 = sphi 0, %s210
      %s211 = sphi 0, %s208
      %s212 = sphi 0, %s211
      %s228 = sphi 0, %s212
      %s234 = sphi 0, %s236
      %s237 = sphi 0, %s234
      %s238 = sphi 0, %s237
      %s254 = sphi 0, %s238
      %s260 = sphi 0, %s262
      %s263 = sphi 0, %s260
      %s264 = sphi 0, %s263
      %s280 = sphi 0, %s264
      %s286 = sphi 0, %s288
      %s289 = sphi 0, %s286
      %s290 = sphi 0, %s289
      %s306 = sphi 0, %s290
      %s312 = sphi 0, %s314
      %s315 = sphi 0, %s312
      %s316 = sphi 0, %s315
      %s332 = sphi 0, %s316
      %s338 = sphi 0, %s340
      %s341 = sphi 0, %s338
      %s342 = sphi 0, %s341
      %s358 = sphi 0, %s342
      %s364 = sphi 0, %s366
      %s367 = sphi 0, %s364
      %s368 = sphi 0, %s367
      %s384 = sphi 0, %s368
      %s388 = sphi 0, %s388
      %s390 = sphi 0, %s388
      %s391 = sphi 0, %s390
      %s405 = sphi 0, %s391
      %s409 = sphi 0, %s409
      %s411 = sphi 0, %s409
      %s412 = sphi 0, %s411
      %s426 = sphi 0, %s412
      %s432 = sphi 0, %s434
      %s435 = sphi 0, %s432
      %s436 = sphi 0, %s435
      %s452 = sphi 0, %s436
    $region4: #{tpu_custom_call.1} parent=1 // loop_header_branch
      %33 = sbr.rel (%p31) target = $region8
    $region5: #{tpu_custom_call.1} parent=1 // loop_body
      %s35 = ssub.s32 %s30, 1
      %s36 = ssub.s32 %s30, 2
      %s43 = sadd.s32 1, %s38
      %p44 = scmp.ge.s32.totalorder %s43, 2
      %s45 = scalar_select %p44, 0, %s43
      %s46 = sadd.s32 1, %s37
      %s47 = scalar_select %p44, %s46, %s37
      %p48 = scmp.ge.s32.totalorder %s47, 2
      %s49 = scalar_select %p48, 0, %s47
      %s50 = ssub.s32 %s37, %s49
      %p51 = scmp.eq.s32.totalorder %s50, 0
      %s53 = sadd.s32 %s52, 1
      %s54 = scalar_select %p51, %s52, %s53
      %p57 = pneg %p51
      %p58 = scmp.eq.s32.totalorder %s30, 3
      %p59 = por %p57, %p58
      %p60 = scmp.ne.s32.totalorder %s52, %s55
      %p61 = scmp.eq.s32.totalorder %s30, 0
      %p62 = por %p60, %p61
      %p63 = scmp.ne.s32.totalorder %s52, %s55
      %p64 = scmp.eq.s32.totalorder %s35, 3
      %p65 = por %p63, %p64
      %p66 = scmp.ne.s32.totalorder %s55, %s56
      %p67 = scmp.eq.s32.totalorder %s35, 0
      %p68 = por %p66, %p67
      %p69 = scmp.ne.s32.totalorder %s55, %s56
      %p70 = scmp.eq.s32.totalorder %s36, 3
      %p71 = por %p69, %p70
      %p73 = scmp.ne.s32.totalorder %s56, %s72
      %p74 = scmp.eq.s32.totalorder %s36, 0
      %p75 = por %p73, %p74
      %s76 = ssub.s32 %s38, %s45
      %p77 = scmp.eq.s32.totalorder %s76, 0
      %s79 = sadd.s32 %s78, 1
      %s80 = scalar_select %p77, %s78, %s79
      %p83 = pneg %p77
      %p84 = scmp.eq.s32.totalorder %s30, 3
      %p85 = por %p83, %p84
      %p86 = scmp.ne.s32.totalorder %s78, %s81
      %p87 = scmp.eq.s32.totalorder %s30, 0
      %p88 = por %p86, %p87
      %p89 = scmp.ne.s32.totalorder %s78, %s81
      %p90 = scmp.eq.s32.totalorder %s35, 3
      %p91 = por %p89, %p90
      %p92 = scmp.ne.s32.totalorder %s81, %s82
      %p93 = scmp.eq.s32.totalorder %s35, 0
      %p94 = por %p92, %p93
      %p95 = scmp.ne.s32.totalorder %s81, %s82
      %p96 = scmp.eq.s32.totalorder %s36, 3
      %p97 = por %p95, %p96
      %p99 = scmp.ne.s32.totalorder %s82, %s98
      %p100 = scmp.eq.s32.totalorder %s36, 0
      %p101 = por %p99, %p100
      %s102 = ssub.s32 %s38, %s45
      %p103 = scmp.eq.s32.totalorder %s102, 0
      %s105 = sadd.s32 %s104, 1
      %s106 = scalar_select %p103, %s104, %s105
      %p109 = pneg %p103
      %p110 = scmp.eq.s32.totalorder %s30, 3
      %p111 = por %p109, %p110
      %p112 = scmp.ne.s32.totalorder %s104, %s107
      %p113 = scmp.eq.s32.totalorder %s30, 0
      %p114 = por %p112, %p113
      %p115 = scmp.ne.s32.totalorder %s104, %s107
      %p116 = scmp.eq.s32.totalorder %s35, 3
      %p117 = por %p115, %p116
      %p118 = scmp.ne.s32.totalorder %s107, %s108
      %p119 = scmp.eq.s32.totalorder %s35, 0
      %p120 = por %p118, %p119
      %p121 = scmp.ne.s32.totalorder %s107, %s108
      %p122 = scmp.eq.s32.totalorder %s36, 3
      %p123 = por %p121, %p122
      %p125 = scmp.ne.s32.totalorder %s108, %s124
      %p126 = scmp.eq.s32.totalorder %s36, 0
      %p127 = por %p125, %p126
      %s128 = ssub.s32 %s38, %s45
      %p129 = scmp.eq.s32.totalorder %s128, 0
      %s131 = sadd.s32 %s130, 1
      %s132 = scalar_select %p129, %s130, %s131
      %p135 = pneg %p129
      %p136 = scmp.eq.s32.totalorder %s30, 3
      %p137 = por %p135, %p136
      %p138 = scmp.ne.s32.totalorder %s130, %s133
      %p139 = scmp.eq.s32.totalorder %s30, 0
      %p140 = por %p138, %p139
      %p141 = scmp.ne.s32.totalorder %s130, %s133
      %p142 = scmp.eq.s32.totalorder %s35, 3
      %p143 = por %p141, %p142
      %p144 = scmp.ne.s32.totalorder %s133, %s134
      %p145 = scmp.eq.s32.totalorder %s35, 0
      %p146 = por %p144, %p145
      %p147 = scmp.ne.s32.totalorder %s133, %s134
      %p148 = scmp.eq.s32.totalorder %s36, 3
      %p149 = por %p147, %p148
      %p151 = scmp.ne.s32.totalorder %s134, %s150
      %p152 = scmp.eq.s32.totalorder %s36, 0
      %p153 = por %p151, %p152
      %s154 = ssub.s32 %s38, %s45
      %p155 = scmp.eq.s32.totalorder %s154, 0
      %s157 = sadd.s32 %s156, 1
      %s158 = scalar_select %p155, %s156, %s157
      %p161 = pneg %p155
      %p162 = scmp.eq.s32.totalorder %s30, 3
      %p163 = por %p161, %p162
      %p164 = scmp.ne.s32.totalorder %s156, %s159
      %p165 = scmp.eq.s32.totalorder %s30, 0
      %p166 = por %p164, %p165
      %p167 = scmp.ne.s32.totalorder %s156, %s159
      %p168 = scmp.eq.s32.totalorder %s35, 3
      %p169 = por %p167, %p168
      %p170 = scmp.ne.s32.totalorder %s159, %s160
      %p171 = scmp.eq.s32.totalorder %s35, 0
      %p172 = por %p170, %p171
      %p173 = scmp.ne.s32.totalorder %s159, %s160
      %p174 = scmp.eq.s32.totalorder %s36, 3
      %p175 = por %p173, %p174
      %p177 = scmp.ne.s32.totalorder %s160, %s176
      %p178 = scmp.eq.s32.totalorder %s36, 0
      %p179 = por %p177, %p178
      %s180 = ssub.s32 %s38, %s45
      %p181 = scmp.eq.s32.totalorder %s180, 0
      %s183 = sadd.s32 %s182, 1
      %s184 = scalar_select %p181, %s182, %s183
      %p187 = pneg %p181
      %p188 = scmp.eq.s32.totalorder %s30, 3
      %p189 = por %p187, %p188
      %p190 = scmp.ne.s32.totalorder %s182, %s185
      %p191 = scmp.eq.s32.totalorder %s30, 0
      %p192 = por %p190, %p191
      %p193 = scmp.ne.s32.totalorder %s182, %s185
      %p194 = scmp.eq.s32.totalorder %s35, 3
      %p195 = por %p193, %p194
      %p196 = scmp.ne.s32.totalorder %s185, %s186
      %p197 = scmp.eq.s32.totalorder %s35, 0
      %p198 = por %p196, %p197
      %p199 = scmp.ne.s32.totalorder %s185, %s186
      %p200 = scmp.eq.s32.totalorder %s36, 3
      %p201 = por %p199, %p200
      %p203 = scmp.ne.s32.totalorder %s186, %s202
      %p204 = scmp.eq.s32.totalorder %s36, 0
      %p205 = por %p203, %p204
      %s206 = ssub.s32 %s38, %s45
      %p207 = scmp.eq.s32.totalorder %s206, 0
      %s209 = sadd.s32 %s208, 1
      %s210 = scalar_select %p207, %s208, %s209
      %p213 = pneg %p207
      %p214 = scmp.eq.s32.totalorder %s30, 3
      %p215 = por %p213, %p214
      %p216 = scmp.ne.s32.totalorder %s208, %s211
      %p217 = scmp.eq.s32.totalorder %s30, 0
      %p218 = por %p216, %p217
      %p219 = scmp.ne.s32.totalorder %s208, %s211
      %p220 = scmp.eq.s32.totalorder %s35, 3
      %p221 = por %p219, %p220
      %p222 = scmp.ne.s32.totalorder %s211, %s212
      %p223 = scmp.eq.s32.totalorder %s35, 0
      %p224 = por %p222, %p223
      %p225 = scmp.ne.s32.totalorder %s211, %s212
      %p226 = scmp.eq.s32.totalorder %s36, 3
      %p227 = por %p225, %p226
      %p229 = scmp.ne.s32.totalorder %s212, %s228
      %p230 = scmp.eq.s32.totalorder %s36, 0
      %p231 = por %p229, %p230
      %s232 = ssub.s32 %s38, %s45
      %p233 = scmp.eq.s32.totalorder %s232, 0
      %s235 = sadd.s32 %s234, 1
      %s236 = scalar_select %p233, %s234, %s235
      %p239 = pneg %p233
      %p240 = scmp.eq.s32.totalorder %s30, 3
      %p241 = por %p239, %p240
      %p242 = scmp.ne.s32.totalorder %s234, %s237
      %p243 = scmp.eq.s32.totalorder %s30, 0
      %p244 = por %p242, %p243
      %p245 = scmp.ne.s32.totalorder %s234, %s237
      %p246 = scmp.eq.s32.totalorder %s35, 3
      %p247 = por %p245, %p246
      %p248 = scmp.ne.s32.totalorder %s237, %s238
      %p249 = scmp.eq.s32.totalorder %s35, 0
      %p250 = por %p248, %p249
      %p251 = scmp.ne.s32.totalorder %s237, %s238
      %p252 = scmp.eq.s32.totalorder %s36, 3
      %p253 = por %p251, %p252
      %p255 = scmp.ne.s32.totalorder %s238, %s254
      %p256 = scmp.eq.s32.totalorder %s36, 0
      %p257 = por %p255, %p256
      %s258 = ssub.s32 %s38, %s45
      %p259 = scmp.eq.s32.totalorder %s258, 0
      %s261 = sadd.s32 %s260, 1
      %s262 = scalar_select %p259, %s260, %s261
      %p265 = pneg %p259
      %p266 = scmp.eq.s32.totalorder %s30, 3
      %p267 = por %p265, %p266
      %p268 = scmp.ne.s32.totalorder %s260, %s263
      %p269 = scmp.eq.s32.totalorder %s30, 0
      %p270 = por %p268, %p269
      %p271 = scmp.ne.s32.totalorder %s260, %s263
      %p272 = scmp.eq.s32.totalorder %s35, 3
      %p273 = por %p271, %p272
      %p274 = scmp.ne.s32.totalorder %s263, %s264
      %p275 = scmp.eq.s32.totalorder %s35, 0
      %p276 = por %p274, %p275
      %p277 = scmp.ne.s32.totalorder %s263, %s264
      %p278 = scmp.eq.s32.totalorder %s36, 3
      %p279 = por %p277, %p278
      %p281 = scmp.ne.s32.totalorder %s264, %s280
      %p282 = scmp.eq.s32.totalorder %s36, 0
      %p283 = por %p281, %p282
      %s284 = ssub.s32 %s38, %s45
      %p285 = scmp.eq.s32.totalorder %s284, 0
      %s287 = sadd.s32 %s286, 1
      %s288 = scalar_select %p285, %s286, %s287
      %p291 = pneg %p285
      %p292 = scmp.eq.s32.totalorder %s30, 3
      %p293 = por %p291, %p292
      %p294 = scmp.ne.s32.totalorder %s286, %s289
      %p295 = scmp.eq.s32.totalorder %s30, 0
      %p296 = por %p294, %p295
      %p297 = scmp.ne.s32.totalorder %s286, %s289
      %p298 = scmp.eq.s32.totalorder %s35, 3
      %p299 = por %p297, %p298
      %p300 = scmp.ne.s32.totalorder %s289, %s290
      %p301 = scmp.eq.s32.totalorder %s35, 0
      %p302 = por %p300, %p301
      %p303 = scmp.ne.s32.totalorder %s289, %s290
      %p304 = scmp.eq.s32.totalorder %s36, 3
      %p305 = por %p303, %p304
      %p307 = scmp.ne.s32.totalorder %s290, %s306
      %p308 = scmp.eq.s32.totalorder %s36, 0
      %p309 = por %p307, %p308
      %s310 = ssub.s32 %s38, %s45
      %p311 = scmp.eq.s32.totalorder %s310, 0
      %s313 = sadd.s32 %s312, 1
      %s314 = scalar_select %p311, %s312, %s313
      %p317 = pneg %p311
      %p318 = scmp.eq.s32.totalorder %s30, 3
      %p319 = por %p317, %p318
      %p320 = scmp.ne.s32.totalorder %s312, %s315
      %p321 = scmp.eq.s32.totalorder %s30, 0
      %p322 = por %p320, %p321
      %p323 = scmp.ne.s32.totalorder %s312, %s315
      %p324 = scmp.eq.s32.totalorder %s35, 3
      %p325 = por %p323, %p324
      %p326 = scmp.ne.s32.totalorder %s315, %s316
      %p327 = scmp.eq.s32.totalorder %s35, 0
      %p328 = por %p326, %p327
      %p329 = scmp.ne.s32.totalorder %s315, %s316
      %p330 = scmp.eq.s32.totalorder %s36, 3
      %p331 = por %p329, %p330
      %p333 = scmp.ne.s32.totalorder %s316, %s332
      %p334 = scmp.eq.s32.totalorder %s36, 0
      %p335 = por %p333, %p334
      %s336 = ssub.s32 %s38, %s45
      %p337 = scmp.eq.s32.totalorder %s336, 0
      %s339 = sadd.s32 %s338, 1
      %s340 = scalar_select %p337, %s338, %s339
      %p343 = pneg %p337
      %p344 = scmp.eq.s32.totalorder %s30, 3
      %p345 = por %p343, %p344
      %p346 = scmp.ne.s32.totalorder %s338, %s341
      %p347 = scmp.eq.s32.totalorder %s30, 0
      %p348 = por %p346, %p347
      %p349 = scmp.ne.s32.totalorder %s338, %s341
      %p350 = scmp.eq.s32.totalorder %s35, 3
      %p351 = por %p349, %p350
      %p352 = scmp.ne.s32.totalorder %s341, %s342
      %p353 = scmp.eq.s32.totalorder %s35, 0
      %p354 = por %p352, %p353
      %p355 = scmp.ne.s32.totalorder %s341, %s342
      %p356 = scmp.eq.s32.totalorder %s36, 3
      %p357 = por %p355, %p356
      %p359 = scmp.ne.s32.totalorder %s342, %s358
      %p360 = scmp.eq.s32.totalorder %s36, 0
      %p361 = por %p359, %p360
      %s362 = ssub.s32 %s38, %s45
      %p363 = scmp.eq.s32.totalorder %s362, 0
      %s365 = sadd.s32 %s364, 1
      %s366 = scalar_select %p363, %s364, %s365
      %p369 = pneg %p363
      %p370 = scmp.eq.s32.totalorder %s30, 3
      %p371 = por %p369, %p370
      %p372 = scmp.ne.s32.totalorder %s364, %s367
      %p373 = scmp.eq.s32.totalorder %s30, 0
      %p374 = por %p372, %p373
      %p375 = scmp.ne.s32.totalorder %s364, %s367
      %p376 = scmp.eq.s32.totalorder %s35, 3
      %p377 = por %p375, %p376
      %p378 = scmp.ne.s32.totalorder %s367, %s368
      %p379 = scmp.eq.s32.totalorder %s35, 0
      %p380 = por %p378, %p379
      %p381 = scmp.ne.s32.totalorder %s367, %s368
      %p382 = scmp.eq.s32.totalorder %s36, 3
      %p383 = por %p381, %p382
      %p385 = scmp.ne.s32.totalorder %s368, %s384
      %p386 = scmp.eq.s32.totalorder %s36, 0
      %p387 = por %p385, %p386
      %s389 = sadd.s32 %s388, 1
      %p392 = scmp.eq.s32.totalorder %s30, 3
      %p393 = scmp.ne.s32.totalorder %s388, %s390
      %p394 = scmp.eq.s32.totalorder %s30, 0
      %p395 = por %p393, %p394
      %p396 = scmp.ne.s32.totalorder %s388, %s390
      %p397 = scmp.eq.s32.totalorder %s35, 3
      %p398 = por %p396, %p397
      %p399 = scmp.ne.s32.totalorder %s390, %s391
      %p400 = scmp.eq.s32.totalorder %s35, 0
      %p401 = por %p399, %p400
      %p402 = scmp.ne.s32.totalorder %s390, %s391
      %p403 = scmp.eq.s32.totalorder %s36, 3
      %p404 = por %p402, %p403
      %p406 = scmp.ne.s32.totalorder %s391, %s405
      %p407 = scmp.eq.s32.totalorder %s36, 0
      %p408 = por %p406, %p407
      %s410 = sadd.s32 %s409, 1
      %p413 = scmp.eq.s32.totalorder %s30, 3
      %p414 = scmp.ne.s32.totalorder %s409, %s411
      %p415 = scmp.eq.s32.totalorder %s30, 0
      %p416 = por %p414, %p415
      %p417 = scmp.ne.s32.totalorder %s409, %s411
      %p418 = scmp.eq.s32.totalorder %s35, 3
      %p419 = por %p417, %p418
      %p420 = scmp.ne.s32.totalorder %s411, %s412
      %p421 = scmp.eq.s32.totalorder %s35, 0
      %p422 = por %p420, %p421
      %p423 = scmp.ne.s32.totalorder %s411, %s412
      %p424 = scmp.eq.s32.totalorder %s36, 3
      %p425 = por %p423, %p424
      %p427 = scmp.ne.s32.totalorder %s412, %s426
      %p428 = scmp.eq.s32.totalorder %s36, 0
      %p429 = por %p427, %p428
      %s430 = ssub.s32 %s37, %s49
      %p431 = scmp.eq.s32.totalorder %s430, 0
      %s433 = sadd.s32 %s432, 1
      %s434 = scalar_select %p431, %s432, %s433
      %p437 = pneg %p431
      %p438 = scmp.eq.s32.totalorder %s30, 3
      %p439 = por %p437, %p438
      %p440 = scmp.ne.s32.totalorder %s432, %s435
      %p441 = scmp.eq.s32.totalorder %s30, 0
      %p442 = por %p440, %p441
      %p443 = scmp.ne.s32.totalorder %s432, %s435
      %p444 = scmp.eq.s32.totalorder %s35, 3
      %p445 = por %p443, %p444
      %p446 = scmp.ne.s32.totalorder %s435, %s436
      %p447 = scmp.eq.s32.totalorder %s35, 0
      %p448 = por %p446, %p447
      %p449 = scmp.ne.s32.totalorder %s435, %s436
      %p450 = scmp.eq.s32.totalorder %s36, 3
      %p451 = por %p449, %p450
      %p453 = scmp.ne.s32.totalorder %s436, %s452
      %p454 = scmp.eq.s32.totalorder %s36, 0
      %p455 = por %p453, %p454
      %p456 = scmp.le.s32.totalorder 1, %s30
      %p457 = scmp.lt.s32.totalorder %s30, 5
      %p458 = pnand %p456, %p457
      %p459 = pneg %p458
      // Predicated region
      $region9: #{tpu_custom_call.1} parent=5 // pred_check
        _
      $region10: #{tpu_custom_call.1} parent=5 // pred_check_branch
        %461 = sbr.rel (%p458) target = $region12
      $region11: #{tpu_custom_call.1} parent=5 // pred_region
        %s462 = ssub.s32 %s30, 1
        // Predicated region
        $region13: #{tpu_custom_call.1} parent=11 // pred_check
          %p463 = pneg %p401
        $region14: #{tpu_custom_call.1} parent=11 // pred_check_branch
          %465 = sbr.rel (%p463) target = $region16
        $region15: #{tpu_custom_call.1} parent=11 // pred_region
          _
        $region16: #{tpu_custom_call.1} parent=11 // pred_fallthru
          _
        // Predicated region
        $region17: #{tpu_custom_call.1} parent=11 // pred_check
          %p466 = pneg %p422
        $region18: #{tpu_custom_call.1} parent=11 // pred_check_branch
          %468 = sbr.rel (%p466) target = $region20
        $region19: #{tpu_custom_call.1} parent=11 // pred_region
          _
        $region20: #{tpu_custom_call.1} parent=11 // pred_fallthru
          _
      $region12: #{tpu_custom_call.1} parent=5 // pred_fallthru
        _
      %p469 = scmp.lt.s32.totalorder %s30, 4
      // Predicated region
      $region21: #{tpu_custom_call.1} parent=5 // pred_check
        %p470 = pneg %p469
      $region22: #{tpu_custom_call.1} parent=5 // pred_check_branch
        %472 = sbr.rel (%p470) target = $region24
      $region23: #{tpu_custom_call.1} parent=5 // pred_region
        // Predicated region
        $region25: #{tpu_custom_call.1} parent=23 // pred_check
          %p473 = pneg %p62
        $region26: #{tpu_custom_call.1} parent=23 // pred_check_branch
          %475 = sbr.rel (%p473) target = $region28
        $region27: #{tpu_custom_call.1} parent=23 // pred_region
          %s476 = sand.u32 %s52, 1
          %s477 = scalar_lea.sflag [#allocation4], %s476
          %s478 = sand.u32 %s52, 1
          %s479 = smul.addr %s478, 8
          %s480 = scalar_lea.vmem [#allocation3], %s479
          %s482 = ssub.s32 128, 128
          %483 = vsyncadd %s477, %s482
          %s484 = smul.addr %s37, 128
          %s485 = scalar_lea.hbm %s0, %s484
          %s487 = sshll.u32 %s480, 4
          %s488 = int_to_ptr.vmem [resolvable:$true] %s487
          %490 = dma.hbm_to_vmem [thread:$0]  %s485, 128, %s488, %s477
        $region28: #{tpu_custom_call.1} parent=23 // pred_fallthru
          _
        // Predicated region
        $region29: #{tpu_custom_call.1} parent=23 // pred_check
          %p491 = pneg %p88
        $region30: #{tpu_custom_call.1} parent=23 // pred_check_branch
          %493 = sbr.rel (%p491) target = $region32
        $region31: #{tpu_custom_call.1} parent=23 // pred_region
          %p494 = scmp.lt.s32.totalorder %s38, 1
          %s495 = scalar_select %p494, %s38, 1
          %s496 = smul.addr %s495, 4
          %s497 = smul.addr %s496, 4
          %s498 = scalar_lea.vmem %s1, %s497
        $region32: #{tpu_custom_call.1} parent=23 // pred_fallthru
          _
        // Predicated region
        $region33: #{tpu_custom_call.1} parent=23 // pred_check
          %p499 = pneg %p114
        $region34: #{tpu_custom_call.1} parent=23 // pred_check_branch
          %501 = sbr.rel (%p499) target = $region36
        $region35: #{tpu_custom_call.1} parent=23 // pred_region
          %p502 = scmp.lt.s32.totalorder %s38, 1
          %s503 = scalar_select %p502, %s38, 1
          %s504 = scalar_lea.vmem %s2, %s503
        $region36: #{tpu_custom_call.1} parent=23 // pred_fallthru
          _
        // Predicated region
        $region37: #{tpu_custom_call.1} parent=23 // pred_check
          %p505 = pneg %p140
        $region38: #{tpu_custom_call.1} parent=23 // pred_check_branch
          %507 = sbr.rel (%p505) target = $region40
        $region39: #{tpu_custom_call.1} parent=23 // pred_region
          %p508 = scmp.lt.s32.totalorder %s38, 1
          %s509 = scalar_select %p508, %s38, 1
          %s510 = smul.addr %s509, 4
          %s511 = smul.addr %s510, 4
          %s512 = scalar_lea.vmem %s3, %s511
        $region40: #{tpu_custom_call.1} parent=23 // pred_fallthru
          _
        // Predicated region
        $region41: #{tpu_custom_call.1} parent=23 // pred_check
          %p513 = pneg %p166
        $region42: #{tpu_custom_call.1} parent=23 // pred_check_branch
          %515 = sbr.rel (%p513) target = $region44
        $region43: #{tpu_custom_call.1} parent=23 // pred_region
          %s516 = sand.u32 %s156, 1
          %s517 = scalar_lea.sflag [#allocation7], %s516
          %s518 = sand.u32 %s156, 1
          %s519 = scalar_lea.vmem [#allocation6], %s518
          %s521 = ssub.s32 16, 16
          %522 = vsyncadd %s517, %s521
          %s523 = smul.addr %s38, 16
          %s524 = scalar_lea.hbm %s4, %s523
          %s526 = sshll.u32 %s519, 4
          %s527 = int_to_ptr.vmem [resolvable:$true] %s526
          %529 = dma.hbm_to_vmem [thread:$0]  %s524, 16, %s527, %s517
        $region44: #{tpu_custom_call.1} parent=23 // pred_fallthru
          _
        // Predicated region
        $region45: #{tpu_custom_call.1} parent=23 // pred_check
          %p530 = pneg %p192
        $region46: #{tpu_custom_call.1} parent=23 // pred_check_branch
          %532 = sbr.rel (%p530) target = $region48
        $region47: #{tpu_custom_call.1} parent=23 // pred_region
          %p533 = scmp.lt.s32.totalorder %s38, 1
          %s534 = scalar_select %p533, %s38, 1
          %s535 = smul.addr %s534, 4
          %s536 = smul.addr %s535, 4
          %s537 = scalar_lea.vmem %s5, %s536
        $region48: #{tpu_custom_call.1} parent=23 // pred_fallthru
          _
        // Predicated region
        $region49: #{tpu_custom_call.1} parent=23 // pred_check
          %p538 = pneg %p218
        $region50: #{tpu_custom_call.1} parent=23 // pred_check_branch
          %540 = sbr.rel (%p538) target = $region52
        $region51: #{tpu_custom_call.1} parent=23 // pred_region
          %p541 = scmp.lt.s32.totalorder %s38, 1
          %s542 = scalar_select %p541, %s38, 1
          %s543 = scalar_lea.vmem %s6, %s542
        $region52: #{tpu_custom_call.1} parent=23 // pred_fallthru
          _
        // Predicated region
        $region53: #{tpu_custom_call.1} parent=23 // pred_check
          %p544 = pneg %p244
        $region54: #{tpu_custom_call.1} parent=23 // pred_check_branch
          %546 = sbr.rel (%p544) target = $region56
        $region55: #{tpu_custom_call.1} parent=23 // pred_region
          %p547 = scmp.lt.s32.totalorder %s38, 1
          %s548 = scalar_select %p547, %s38, 1
          %s549 = smul.addr %s548, 8
          %s550 = smul.addr %s549, 4
          %s551 = scalar_lea.vmem %s7, %s550
        $region56: #{tpu_custom_call.1} parent=23 // pred_fallthru
          _
        // Predicated region
        $region57: #{tpu_custom_call.1} parent=23 // pred_check
          %p552 = pneg %p270
        $region58: #{tpu_custom_call.1} parent=23 // pred_check_branch
          %554 = sbr.rel (%p552) target = $region60
        $region59: #{tpu_custom_call.1} parent=23 // pred_region
          %p555 = scmp.lt.s32.totalorder %s38, 1
          %s556 = scalar_select %p555, %s38, 1
          %s557 = scalar_lea.vmem %s8, %s556
        $region60: #{tpu_custom_call.1} parent=23 // pred_fallthru
          _
        // Predicated region
        $region61: #{tpu_custom_call.1} parent=23 // pred_check
          %p558 = pneg %p296
        $region62: #{tpu_custom_call.1} parent=23 // pred_check_branch
          %560 = sbr.rel (%p558) target = $region64
        $region63: #{tpu_custom_call.1} parent=23 // pred_region
          %p561 = scmp.lt.s32.totalorder %s38, 1
          %s562 = scalar_select %p561, %s38, 1
          %s563 = scalar_lea.vmem %s9, %s562
        $region64: #{tpu_custom_call.1} parent=23 // pred_fallthru
          _
        // Predicated region
        $region65: #{tpu_custom_call.1} parent=23 // pred_check
          %p564 = pneg %p322
        $region66: #{tpu_custom_call.1} parent=23 // pred_check_branch
          %566 = sbr.rel (%p564) target = $region68
        $region67: #{tpu_custom_call.1} parent=23 // pred_region
          %p567 = scmp.lt.s32.totalorder %s38, 1
          %s568 = scalar_select %p567, %s38, 1
          %s569 = scalar_lea.vmem %s10, %s568
        $region68: #{tpu_custom_call.1} parent=23 // pred_fallthru
          _
        // Predicated region
        $region69: #{tpu_custom_call.1} parent=23 // pred_check
          %p570 = pneg %p348
        $region70: #{tpu_custom_call.1} parent=23 // pred_check_branch
          %572 = sbr.rel (%p570) target = $region72
        $region71: #{tpu_custom_call.1} parent=23 // pred_region
          %p573 = scmp.lt.s32.totalorder %s38, 1
          %s574 = scalar_select %p573, %s38, 1
          %s575 = scalar_lea.vmem %s11, %s574
        $region72: #{tpu_custom_call.1} parent=23 // pred_fallthru
          _
        // Predicated region
        $region73: #{tpu_custom_call.1} parent=23 // pred_check
          %p576 = pneg %p374
        $region74: #{tpu_custom_call.1} parent=23 // pred_check_branch
          %578 = sbr.rel (%p576) target = $region76
        $region75: #{tpu_custom_call.1} parent=23 // pred_region
          %p579 = scmp.lt.s32.totalorder %s38, 1
          %s580 = scalar_select %p579, %s38, 1
          %s581 = scalar_lea.vmem %s12, %s580
        $region76: #{tpu_custom_call.1} parent=23 // pred_fallthru
          _
      $region24: #{tpu_custom_call.1} parent=5 // pred_fallthru
        _
      %p582 = scmp.le.s32.totalorder 1, %s30
      %p583 = scmp.lt.s32.totalorder %s30, 5
      %p584 = pnand %p582, %p583
      %p585 = pneg %p584
      // Predicated region
      $region77: #{tpu_custom_call.1} parent=5 // pred_check
        _
      $region78: #{tpu_custom_call.1} parent=5 // pred_check_branch
        %587 = sbr.rel (%p584) target = $region80
      $region79: #{tpu_custom_call.1} parent=5 // pred_region
        %s588 = ssub.s32 %s30, 1
        %s589 = sand.u32 %s55, 1
        %s590 = scalar_lea.sflag [#allocation4], %s589
        %s591 = sand.u32 %s55, 1
        %s592 = smul.addr %s591, 8
        %s593 = scalar_lea.vmem [#allocation3], %s592
        // Predicated region
        $region81: #{tpu_custom_call.1} parent=79 // pred_check
          %p594 = pneg %p68
        $region82: #{tpu_custom_call.1} parent=79 // pred_check_branch
          %596 = sbr.rel (%p594) target = $region84
        $region83: #{tpu_custom_call.1} parent=79 // pred_region
          %597 = dma.done %s590, 128
        $region84: #{tpu_custom_call.1} parent=79 // pred_fallthru
          _
        %s598 = sand.u32 %s159, 1
        %s599 = scalar_lea.sflag [#allocation7], %s598
        %s600 = sand.u32 %s159, 1
        %s601 = scalar_lea.vmem [#allocation6], %s600
        // Predicated region
        $region85: #{tpu_custom_call.1} parent=79 // pred_check
          %p602 = pneg %p172
        $region86: #{tpu_custom_call.1} parent=79 // pred_check_branch
          %604 = sbr.rel (%p602) target = $region88
        $region87: #{tpu_custom_call.1} parent=79 // pred_region
          %605 = dma.done %s599, 16
        $region88: #{tpu_custom_call.1} parent=79 // pred_fallthru
          _
        %s606 = sand.u32 %s55, 1
        %s607 = scalar_lea.sflag [#allocation4], %s606
        %s608 = sand.u32 %s55, 1
        %s609 = smul.addr %s608, 8
        %s610 = scalar_lea.vmem [#allocation3], %s609
        %p611 = pneg %p68
        %p612 = pneg %p65
        %p613 = scmp.lt.s32.totalorder %s40, 1
        %s614 = scalar_select %p613, %s40, 1
        %s615 = smul.addr %s614, 4
        %s616 = smul.addr %s615, 4
        %s617 = scalar_lea.vmem %s1, %s616
        %p618 = pneg %p94
        %p619 = pneg %p91
        %p620 = scmp.lt.s32.totalorder %s40, 1
        %s621 = scalar_select %p620, %s40, 1
        %s622 = scalar_lea.vmem %s2, %s621
        %p623 = pneg %p120
        %p624 = pneg %p117
        %p625 = scmp.lt.s32.totalorder %s40, 1
        %s626 = scalar_select %p625, %s40, 1
        %s627 = smul.addr %s626, 4
        %s628 = smul.addr %s627, 4
        %s629 = scalar_lea.vmem %s3, %s628
        %p630 = pneg %p146
        %p631 = pneg %p143
        %s632 = sand.u32 %s159, 1
        %s633 = scalar_lea.sflag [#allocation7], %s632
        %s634 = sand.u32 %s159, 1
        %s635 = scalar_lea.vmem [#allocation6], %s634
        %p636 = pneg %p172
        %p637 = pneg %p169
        %p638 = scmp.lt.s32.totalorder %s40, 1
        %s639 = scalar_select %p638, %s40, 1
        %s640 = smul.addr %s639, 4
        %s641 = smul.addr %s640, 4
        %s642 = scalar_lea.vmem %s5, %s641
        %p643 = pneg %p198
        %p644 = pneg %p195
        %p645 = scmp.lt.s32.totalorder %s40, 1
        %s646 = scalar_select %p645, %s40, 1
        %s647 = scalar_lea.vmem %s6, %s646
        %p648 = pneg %p224
        %p649 = pneg %p221
        %p650 = scmp.lt.s32.totalorder %s40, 1
        %s651 = scalar_select %p650, %s40, 1
        %s652 = smul.addr %s651, 8
        %s653 = smul.addr %s652, 4
        %s654 = scalar_lea.vmem %s7, %s653
        %p655 = pneg %p250
        %p656 = pneg %p247
        %p657 = scmp.lt.s32.totalorder %s40, 1
        %s658 = scalar_select %p657, %s40, 1
        %s659 = scalar_lea.vmem %s8, %s658
        %p660 = pneg %p276
        %p661 = pneg %p273
        %p662 = scmp.lt.s32.totalorder %s40, 1
        %s663 = scalar_select %p662, %s40, 1
        %s664 = scalar_lea.vmem %s9, %s663
        %p665 = pneg %p302
        %p666 = pneg %p299
        %p667 = scmp.lt.s32.totalorder %s40, 1
        %s668 = scalar_select %p667, %s40, 1
        %s669 = scalar_lea.vmem %s10, %s668
        %p670 = pneg %p328
        %p671 = pneg %p325
        %p672 = scmp.lt.s32.totalorder %s40, 1
        %s673 = scalar_select %p672, %s40, 1
        %s674 = scalar_lea.vmem %s11, %s673
        %p675 = pneg %p354
        %p676 = pneg %p351
        %p677 = scmp.lt.s32.totalorder %s40, 1
        %s678 = scalar_select %p677, %s40, 1
        %s679 = scalar_lea.vmem %s12, %s678
        %p680 = pneg %p380
        %p681 = pneg %p377
        %p682 = pneg %p401
        %p683 = pneg %p398
        %p684 = pneg %p422
        %p685 = pneg %p419
        %p686 = pneg %p448
        %p687 = pneg %p445
        %s688 = sand.u32 %s435, 1
        %s689 = scalar_lea.sflag [#allocation5], %s688
        %s690 = sand.u32 %s435, 1
        %s691 = scalar_lea.vmem [#allocation8], %s690
        %p692 = scmp.lt.s32.totalorder %s40, 1
        %s693 = scalar_select %p692, %s40, 1
        %s694 = smul.addr %s693, 4
        %s695 = smul.addr %s694, 4
        %s696 = scalar_lea.vmem %s1, %s695
        %p697 = scmp.lt.s32.totalorder %s40, 1
        %s698 = scalar_select %p697, %s40, 1
        %s699 = scalar_lea.vmem %s2, %s698
        %p700 = scmp.lt.s32.totalorder %s40, 1
        %s701 = scalar_select %p700, %s40, 1
        %s702 = smul.addr %s701, 4
        %s703 = smul.addr %s702, 4
        %s704 = scalar_lea.vmem %s3, %s703
        %p705 = scmp.lt.s32.totalorder %s40, 1
        %s706 = scalar_select %p705, %s40, 1
        %s707 = smul.addr %s706, 4
        %s708 = smul.addr %s707, 4
        %s709 = scalar_lea.vmem %s5, %s708
        %p710 = scmp.lt.s32.totalorder %s40, 1
        %s711 = scalar_select %p710, %s40, 1
        %s712 = scalar_lea.vmem %s6, %s711
        %p713 = scmp.lt.s32.totalorder %s40, 1
        %s714 = scalar_select %p713, %s40, 1
        %s715 = smul.addr %s714, 8
        %s716 = smul.addr %s715, 4
        %s717 = scalar_lea.vmem %s7, %s716
        %p718 = scmp.lt.s32.totalorder %s40, 1
        %s719 = scalar_select %p718, %s40, 1
        %s720 = scalar_lea.vmem %s8, %s719
        %p721 = scmp.lt.s32.totalorder %s40, 1
        %s722 = scalar_select %p721, %s40, 1
        %s723 = scalar_lea.vmem %s9, %s722
        %p724 = scmp.lt.s32.totalorder %s40, 1
        %s725 = scalar_select %p724, %s40, 1
        %s726 = scalar_lea.vmem %s10, %s725
        %p727 = scmp.lt.s32.totalorder %s40, 1
        %s728 = scalar_select %p727, %s40, 1
        %s729 = scalar_lea.vmem %s11, %s728
        %p730 = scmp.lt.s32.totalorder %s40, 1
        %s731 = scalar_select %p730, %s40, 1
        %s732 = scalar_lea.vmem %s12, %s731
        %p734 = scmp.eq.s32.totalorder %s40, 0
        // Predicated region
        $region89: #{tpu_custom_call.1} parent=79 // pred_check
          %p735 = pneg %p734
        $region90: #{tpu_custom_call.1} parent=79 // pred_check_branch
          %737 = sbr.rel (%p735) target = $region92
        $region91: #{tpu_custom_call.1} parent=79 // pred_region
          %v738 = vld [vmem:[%s593] sm:$0xff]
          %vm739 = vcmask 261120
          %740 = vst.msk [vmem:[#allocation2] sm:$0xff] %vm739, %v738
        $region92: #{tpu_custom_call.1} parent=79 // pred_fallthru
          _
        %v741 = vld [vmem:[#allocation2] sm:$0xff]
        %v742 = vpack.c.bf16 %v741, %v741
        %v743 = vld [vmem:[%s696] sm:$0xf]
        %v744 = vld [vmem:[%s696 + $0x4] sm:$0xf]
        %v745 = vld [vmem:[%s696 + $0x8] sm:$0xf]
        %v746 = vld [vmem:[%s696 + $0xc] sm:$0xf]
        %v747 = vld [vmem:[%s699] sm:$0x1]
        %v749 = vlaneseq
        %v750 = vshrl.u32 %v749, 7
        %v751 = vsub.s32 0, %v750
        %v752 = vrot.slane %v747, %v751
        %v758 = vunpack.c.l.b16 %v743
        %v759 = vunpack.c.l.b16 %v744
        %v760 = vunpack.c.l.b16 %v745
        %v761 = vunpack.c.l.b16 %v746
        %v762 = vpack.c.b16 %v759, %v758
        %v763 = vpack.c.b16 %v761, %v760
        %vm766 = vcmask 261120
        %v768 = vsel %vm766, %v742, 0
        %770 = vmatprep.subr.bf16.mxu0 0
        %771 = vmatpush1.bf16.msra.mxu0 %v762
        %772 = vmatprep.subr.bf16.mxu0 0
        %773 = vmatpush1.bf16.msra.mxu0 %v763
        %774 = vmatprep.subr.bf16.mxu0 0
        %775 = vmatpush1.bf16.msra.mxu0 0
        %776 = vmatprep.subr.bf16.mxu0 0
        %777 = vmatpush1.bf16.msra.mxu0 0
        %778 = vmatprep.subr.bf16.mxu0 0
        %779 = vmatpush1.bf16.msra.mxu0 0
        %780 = vmatprep.subr.bf16.mxu0 0
        %781 = vmatpush1.bf16.msra.mxu0 0
        %782 = vmatprep.subr.bf16.mxu0 0
        %783 = vmatpush1.bf16.msra.mxu0 0
        %784 = vmatprep.subr.bf16.mxu0 0
        %785 = vmatpush1.bf16.msra.mxu0 0
        %786 = vmatprep.subr.bf16.mxu0 0
        %787 = vmatpush1.bf16.msra.mxu0 0
        %788 = vmatprep.subr.bf16.mxu0 0
        %789 = vmatpush1.bf16.msra.mxu0 0
        %790 = vmatprep.subr.bf16.mxu0 0
        %791 = vmatpush1.bf16.msra.mxu0 0
        %792 = vmatprep.subr.bf16.mxu0 0
        %793 = vmatpush1.bf16.msra.mxu0 0
        %794 = vmatprep.subr.bf16.mxu0 0
        %795 = vmatpush1.bf16.msra.mxu0 0
        %796 = vmatprep.subr.bf16.mxu0 0
        %797 = vmatpush1.bf16.msra.mxu0 0
        %798 = vmatprep.subr.bf16.mxu0 0
        %799 = vmatpush1.bf16.msra.mxu0 0
        %800 = vmatprep.subr.bf16.mxu0 0
        %801 = vmatpush1.bf16.msra.mxu0 0
        %802 = vmatprep.mubr.bf16.mxu0 0
        %803 = vmatmul.mubr.bf16.gmra.mrb[0].mxu0 %v768
        %v804 = vpop.f32.mrb[0].mxu0
        %v805 = vadd.f32 %v752, %v804
        %v806 = vpop.f32.mrb[0].mxu0
        %v807 = vpop.f32.mrb[0].mxu0
        %v808 = vpop.f32.mrb[0].mxu0
        %809 = vdwg.mxu0
        %811 = vrot.lane.b32.xlu0 %v805, 120
        %v812 = vpop.permute.xlu0 %811
        %814 = vrot.lane.b32.xlu0 %v805, 112
        %v815 = vpop.permute.xlu0 %814
        %817 = vrot.lane.b32.xlu0 %v805, 104
        %v818 = vpop.permute.xlu0 %817
        %v820 = vcombine.low %v805, %v815
        %v821 = vcombine.high %v805, %v815
        %v823 = vunpack.c.l.s4 1983009808
        %v824 = vunpack.c.0.s8 %v823
        %v825 = vlaneseq
        %v826 = vshrl.u32 %v825, 7
        %v827 = vsub.s32 %v824, %v826
        %v828 = vrot.slane %v820, %v827
        %v830 = vunpack.c.l.s4 1983009808
        %v831 = vunpack.c.0.s8 %v830
        %v832 = vlaneseq
        %v833 = vshrl.u32 %v832, 7
        %v834 = vsub.s32 %v831, %v833
        %v835 = vrot.slane %v821, %v834
        %v836 = vcombine.low %v812, %v818
        %v837 = vcombine.high %v812, %v818
        %v839 = vunpack.c.l.s4 1983009808
        %v840 = vunpack.c.0.s8 %v839
        %v841 = vlaneseq
        %v842 = vshrl.u32 %v841, 7
        %v843 = vsub.s32 %v840, %v842
        %v844 = vrot.slane %v836, %v843
        %v846 = vunpack.c.l.s4 1983009808
        %v847 = vunpack.c.0.s8 %v846
        %v848 = vlaneseq
        %v849 = vshrl.u32 %v848, 7
        %v850 = vsub.s32 %v847, %v849
        %v851 = vrot.slane %v837, %v850
        %v852 = vcombine.low %v828, %v844
        %v853 = vcombine.high %v828, %v844
        %v855 = vunpack.c.l.s4 1934713408
        %v856 = vunpack.c.0.s8 %v855
        %v857 = vlaneseq
        %v858 = vshrl.u32 %v857, 7
        %v859 = vsub.s32 %v856, %v858
        %v860 = vrot.slane %v852, %v859
        %v862 = vunpack.c.l.s4 1934713408
        %v863 = vunpack.c.0.s8 %v862
        %v864 = vlaneseq
        %v865 = vshrl.u32 %v864, 7
        %v866 = vsub.s32 %v863, %v865
        %v867 = vrot.slane %v853, %v866
        %v868 = vcombine.low %v835, %v851
        %v869 = vcombine.high %v835, %v851
        %v871 = vunpack.c.l.s4 1934713408
        %v872 = vunpack.c.0.s8 %v871
        %v873 = vlaneseq
        %v874 = vshrl.u32 %v873, 7
        %v875 = vsub.s32 %v872, %v874
        %v876 = vrot.slane %v868, %v875
        %v878 = vunpack.c.l.s4 1934713408
        %v879 = vunpack.c.0.s8 %v878
        %v880 = vlaneseq
        %v881 = vshrl.u32 %v880, 7
        %v882 = vsub.s32 %v879, %v881
        %v883 = vrot.slane %v869, %v882
        %v884 = vcombine.high %v860, 0.0
        %v885 = vcombine.high %v867, 0.0
        %v886 = vcombine.high %v876, 0.0
        %v887 = vcombine.high %v883, 0.0
        %v888 = vcombine.low %v860, %v867
        %v890 = vunpack.c.l.s4 1983009808
        %v891 = vunpack.c.0.s8 %v890
        %v892 = vlaneseq
        %v893 = vshrl.u32 %v892, 7
        %v894 = vsub.s32 %v891, %v893
        %v895 = vrot.slane %v888, %v894
        %v896 = vcombine.low %v884, %v885
        %v898 = vunpack.c.l.s4 1983009808
        %v899 = vunpack.c.0.s8 %v898
        %v900 = vlaneseq
        %v901 = vshrl.u32 %v900, 7
        %v902 = vsub.s32 %v899, %v901
        %v903 = vrot.slane %v896, %v902
        %v904 = vcombine.low %v876, %v883
        %v906 = vunpack.c.l.s4 1983009808
        %v907 = vunpack.c.0.s8 %v906
        %v908 = vlaneseq
        %v909 = vshrl.u32 %v908, 7
        %v910 = vsub.s32 %v907, %v909
        %v911 = vrot.slane %v904, %v910
        %v912 = vcombine.low %v886, %v887
        %v914 = vunpack.c.l.s4 1983009808
        %v915 = vunpack.c.0.s8 %v914
        %v916 = vlaneseq
        %v917 = vshrl.u32 %v916, 7
        %v918 = vsub.s32 %v915, %v917
        %v919 = vrot.slane %v912, %v918
        %v920 = vcombine.low %v895, %v903
        %v921 = vcombine.high %v895, %v903
        %v923 = vunpack.c.l.s4 1934713408
        %v924 = vunpack.c.0.s8 %v923
        %v925 = vlaneseq
        %v926 = vshrl.u32 %v925, 7
        %v927 = vsub.s32 %v924, %v926
        %v928 = vrot.slane %v920, %v927
        %v930 = vunpack.c.l.s4 1934713408
        %v931 = vunpack.c.0.s8 %v930
        %v932 = vlaneseq
        %v933 = vshrl.u32 %v932, 7
        %v934 = vsub.s32 %v931, %v933
        %v935 = vrot.slane %v921, %v934
        %v936 = vcombine.low %v911, %v919
        %v937 = vcombine.high %v911, %v919
        %v939 = vunpack.c.l.s4 1934713408
        %v940 = vunpack.c.0.s8 %v939
        %v941 = vlaneseq
        %v942 = vshrl.u32 %v941, 7
        %v943 = vsub.s32 %v940, %v942
        %v944 = vrot.slane %v936, %v943
        %v946 = vunpack.c.l.s4 1934713408
        %v947 = vunpack.c.0.s8 %v946
        %v948 = vlaneseq
        %v949 = vshrl.u32 %v948, 7
        %v950 = vsub.s32 %v947, %v949
        %v951 = vrot.slane %v937, %v950
        %v952 = vcombine.low %v928, %v944
        %v953 = vcombine.high %v928, %v944
        %v954 = vcombine.low %v935, %v951
        %v955 = vcombine.high %v935, %v951
        %956 = vrot.lane.b32.xlu0 %v805, 96
        %v957 = vpop.permute.xlu0 %956
        %958 = vrot.lane.b32.xlu0 %v812, 96
        %v959 = vpop.permute.xlu0 %958
        %960 = vrot.lane.b32.xlu0 %v815, 96
        %v961 = vpop.permute.xlu0 %960
        %962 = vrot.lane.b32.xlu0 %v818, 96
        %v963 = vpop.permute.xlu0 %962
        %v968 = vcombine.low %v957, %v961
        %v969 = vcombine.high %v957, %v961
        %v971 = vunpack.c.l.s4 1983009808
        %v972 = vunpack.c.0.s8 %v971
        %v973 = vlaneseq
        %v974 = vshrl.u32 %v973, 7
        %v975 = vsub.s32 %v972, %v974
        %v976 = vrot.slane %v968, %v975
        %v978 = vunpack.c.l.s4 1983009808
        %v979 = vunpack.c.0.s8 %v978
        %v980 = vlaneseq
        %v981 = vshrl.u32 %v980, 7
        %v982 = vsub.s32 %v979, %v981
        %v983 = vrot.slane %v969, %v982
        %v984 = vcombine.low %v959, %v963
        %v985 = vcombine.high %v959, %v963
        %v987 = vunpack.c.l.s4 1983009808
        %v988 = vunpack.c.0.s8 %v987
        %v989 = vlaneseq
        %v990 = vshrl.u32 %v989, 7
        %v991 = vsub.s32 %v988, %v990
        %v992 = vrot.slane %v984, %v991
        %v994 = vunpack.c.l.s4 1983009808
        %v995 = vunpack.c.0.s8 %v994
        %v996 = vlaneseq
        %v997 = vshrl.u32 %v996, 7
        %v998 = vsub.s32 %v995, %v997
        %v999 = vrot.slane %v985, %v998
        %v1000 = vcombine.low %v976, %v992
        %v1001 = vcombine.high %v976, %v992
        %v1003 = vunpack.c.l.s4 1934713408
        %v1004 = vunpack.c.0.s8 %v1003
        %v1005 = vlaneseq
        %v1006 = vshrl.u32 %v1005, 7
        %v1007 = vsub.s32 %v1004, %v1006
        %v1008 = vrot.slane %v1000, %v1007
        %v1010 = vunpack.c.l.s4 1934713408
        %v1011 = vunpack.c.0.s8 %v1010
        %v1012 = vlaneseq
        %v1013 = vshrl.u32 %v1012, 7
        %v1014 = vsub.s32 %v1011, %v1013
        %v1015 = vrot.slane %v1001, %v1014
        %v1016 = vcombine.low %v983, %v999
        %v1017 = vcombine.high %v983, %v999
        %v1019 = vunpack.c.l.s4 1934713408
        %v1020 = vunpack.c.0.s8 %v1019
        %v1021 = vlaneseq
        %v1022 = vshrl.u32 %v1021, 7
        %v1023 = vsub.s32 %v1020, %v1022
        %v1024 = vrot.slane %v1016, %v1023
        %v1026 = vunpack.c.l.s4 1934713408
        %v1027 = vunpack.c.0.s8 %v1026
        %v1028 = vlaneseq
        %v1029 = vshrl.u32 %v1028, 7
        %v1030 = vsub.s32 %v1027, %v1029
        %v1031 = vrot.slane %v1017, %v1030
        %v1032 = vcombine.high %v1008, 0.0
        %v1033 = vcombine.high %v1015, 0.0
        %v1034 = vcombine.high %v1024, 0.0
        %v1035 = vcombine.high %v1031, 0.0
        %v1036 = vcombine.low %v1008, %v1015
        %v1038 = vunpack.c.l.s4 1983009808
        %v1039 = vunpack.c.0.s8 %v1038
        %v1040 = vlaneseq
        %v1041 = vshrl.u32 %v1040, 7
        %v1042 = vsub.s32 %v1039, %v1041
        %v1043 = vrot.slane %v1036, %v1042
        %v1044 = vcombine.low %v1032, %v1033
        %v1046 = vunpack.c.l.s4 1983009808
        %v1047 = vunpack.c.0.s8 %v1046
        %v1048 = vlaneseq
        %v1049 = vshrl.u32 %v1048, 7
        %v1050 = vsub.s32 %v1047, %v1049
        %v1051 = vrot.slane %v1044, %v1050
        %v1052 = vcombine.low %v1024, %v1031
        %v1054 = vunpack.c.l.s4 1983009808
        %v1055 = vunpack.c.0.s8 %v1054
        %v1056 = vlaneseq
        %v1057 = vshrl.u32 %v1056, 7
        %v1058 = vsub.s32 %v1055, %v1057
        %v1059 = vrot.slane %v1052, %v1058
        %v1060 = vcombine.low %v1034, %v1035
        %v1062 = vunpack.c.l.s4 1983009808
        %v1063 = vunpack.c.0.s8 %v1062
        %v1064 = vlaneseq
        %v1065 = vshrl.u32 %v1064, 7
        %v1066 = vsub.s32 %v1063, %v1065
        %v1067 = vrot.slane %v1060, %v1066
        %v1068 = vcombine.low %v1043, %v1051
        %v1069 = vcombine.high %v1043, %v1051
        %v1071 = vunpack.c.l.s4 1934713408
        %v1072 = vunpack.c.0.s8 %v1071
        %v1073 = vlaneseq
        %v1074 = vshrl.u32 %v1073, 7
        %v1075 = vsub.s32 %v1072, %v1074
        %v1076 = vrot.slane %v1068, %v1075
        %v1078 = vunpack.c.l.s4 1934713408
        %v1079 = vunpack.c.0.s8 %v1078
        %v1080 = vlaneseq
        %v1081 = vshrl.u32 %v1080, 7
        %v1082 = vsub.s32 %v1079, %v1081
        %v1083 = vrot.slane %v1069, %v1082
        %v1084 = vcombine.low %v1059, %v1067
        %v1085 = vcombine.high %v1059, %v1067
        %v1087 = vunpack.c.l.s4 1934713408
        %v1088 = vunpack.c.0.s8 %v1087
        %v1089 = vlaneseq
        %v1090 = vshrl.u32 %v1089, 7
        %v1091 = vsub.s32 %v1088, %v1090
        %v1092 = vrot.slane %v1084, %v1091
        %v1094 = vunpack.c.l.s4 1934713408
        %v1095 = vunpack.c.0.s8 %v1094
        %v1096 = vlaneseq
        %v1097 = vshrl.u32 %v1096, 7
        %v1098 = vsub.s32 %v1095, %v1097
        %v1099 = vrot.slane %v1085, %v1098
        %v1100 = vcombine.low %v1076, %v1092
        %v1101 = vcombine.high %v1076, %v1092
        %v1102 = vcombine.low %v1083, %v1099
        %v1103 = vcombine.high %v1083, %v1099
        %1104 = vrot.lane.b32.xlu0 %v805, 64
        %v1105 = vpop.permute.xlu0 %1104
        %1106 = vrot.lane.b32.xlu0 %v812, 64
        %v1107 = vpop.permute.xlu0 %1106
        %1108 = vrot.lane.b32.xlu0 %v815, 64
        %v1109 = vpop.permute.xlu0 %1108
        %1110 = vrot.lane.b32.xlu0 %v818, 64
        %v1111 = vpop.permute.xlu0 %1110
        %v1116 = vcombine.low %v1105, %v1109
        %v1117 = vcombine.high %v1105, %v1109
        %v1119 = vunpack.c.l.s4 1983009808
        %v1120 = vunpack.c.0.s8 %v1119
        %v1121 = vlaneseq
        %v1122 = vshrl.u32 %v1121, 7
        %v1123 = vsub.s32 %v1120, %v1122
        %v1124 = vrot.slane %v1116, %v1123
        %v1126 = vunpack.c.l.s4 1983009808
        %v1127 = vunpack.c.0.s8 %v1126
        %v1128 = vlaneseq
        %v1129 = vshrl.u32 %v1128, 7
        %v1130 = vsub.s32 %v1127, %v1129
        %v1131 = vrot.slane %v1117, %v1130
        %v1132 = vcombine.low %v1107, %v1111
        %v1133 = vcombine.high %v1107, %v1111
        %v1135 = vunpack.c.l.s4 1983009808
        %v1136 = vunpack.c.0.s8 %v1135
        %v1137 = vlaneseq
        %v1138 = vshrl.u32 %v1137, 7
        %v1139 = vsub.s32 %v1136, %v1138
        %v1140 = vrot.slane %v1132, %v1139
        %v1142 = vunpack.c.l.s4 1983009808
        %v1143 = vunpack.c.0.s8 %v1142
        %v1144 = vlaneseq
        %v1145 = vshrl.u32 %v1144, 7
        %v1146 = vsub.s32 %v1143, %v1145
        %v1147 = vrot.slane %v1133, %v1146
        %v1148 = vcombine.low %v1124, %v1140
        %v1149 = vcombine.high %v1124, %v1140
        %v1151 = vunpack.c.l.s4 1934713408
        %v1152 = vunpack.c.0.s8 %v1151
        %v1153 = vlaneseq
        %v1154 = vshrl.u32 %v1153, 7
        %v1155 = vsub.s32 %v1152, %v1154
        %v1156 = vrot.slane %v1148, %v1155
        %v1158 = vunpack.c.l.s4 1934713408
        %v1159 = vunpack.c.0.s8 %v1158
        %v1160 = vlaneseq
        %v1161 = vshrl.u32 %v1160, 7
        %v1162 = vsub.s32 %v1159, %v1161
        %v1163 = vrot.slane %v1149, %v1162
        %v1164 = vcombine.low %v1131, %v1147
        %v1165 = vcombine.high %v1131, %v1147
        %v1167 = vunpack.c.l.s4 1934713408
        %v1168 = vunpack.c.0.s8 %v1167
        %v1169 = vlaneseq
        %v1170 = vshrl.u32 %v1169, 7
        %v1171 = vsub.s32 %v1168, %v1170
        %v1172 = vrot.slane %v1164, %v1171
        %v1174 = vunpack.c.l.s4 1934713408
        %v1175 = vunpack.c.0.s8 %v1174
        %v1176 = vlaneseq
        %v1177 = vshrl.u32 %v1176, 7
        %v1178 = vsub.s32 %v1175, %v1177
        %v1179 = vrot.slane %v1165, %v1178
        %v1180 = vcombine.high %v1156, 0.0
        %v1181 = vcombine.high %v1163, 0.0
        %v1182 = vcombine.high %v1172, 0.0
        %v1183 = vcombine.high %v1179, 0.0
        %v1184 = vcombine.low %v1156, %v1163
        %v1186 = vunpack.c.l.s4 1983009808
        %v1187 = vunpack.c.0.s8 %v1186
        %v1188 = vlaneseq
        %v1189 = vshrl.u32 %v1188, 7
        %v1190 = vsub.s32 %v1187, %v1189
        %v1191 = vrot.slane %v1184, %v1190
        %v1192 = vcombine.low %v1180, %v1181
        %v1194 = vunpack.c.l.s4 1983009808
        %v1195 = vunpack.c.0.s8 %v1194
        %v1196 = vlaneseq
        %v1197 = vshrl.u32 %v1196, 7
        %v1198 = vsub.s32 %v1195, %v1197
        %v1199 = vrot.slane %v1192, %v1198
        %v1200 = vcombine.low %v1172, %v1179
        %v1202 = vunpack.c.l.s4 1983009808
        %v1203 = vunpack.c.0.s8 %v1202
        %v1204 = vlaneseq
        %v1205 = vshrl.u32 %v1204, 7
        %v1206 = vsub.s32 %v1203, %v1205
        %v1207 = vrot.slane %v1200, %v1206
        %v1208 = vcombine.low %v1182, %v1183
        %v1210 = vunpack.c.l.s4 1983009808
        %v1211 = vunpack.c.0.s8 %v1210
        %v1212 = vlaneseq
        %v1213 = vshrl.u32 %v1212, 7
        %v1214 = vsub.s32 %v1211, %v1213
        %v1215 = vrot.slane %v1208, %v1214
        %v1216 = vcombine.low %v1191, %v1199
        %v1217 = vcombine.high %v1191, %v1199
        %v1219 = vunpack.c.l.s4 1934713408
        %v1220 = vunpack.c.0.s8 %v1219
        %v1221 = vlaneseq
        %v1222 = vshrl.u32 %v1221, 7
        %v1223 = vsub.s32 %v1220, %v1222
        %v1224 = vrot.slane %v1216, %v1223
        %v1226 = vunpack.c.l.s4 1934713408
        %v1227 = vunpack.c.0.s8 %v1226
        %v1228 = vlaneseq
        %v1229 = vshrl.u32 %v1228, 7
        %v1230 = vsub.s32 %v1227, %v1229
        %v1231 = vrot.slane %v1217, %v1230
        %v1232 = vcombine.low %v1207, %v1215
        %v1233 = vcombine.high %v1207, %v1215
        %v1235 = vunpack.c.l.s4 1934713408
        %v1236 = vunpack.c.0.s8 %v1235
        %v1237 = vlaneseq
        %v1238 = vshrl.u32 %v1237, 7
        %v1239 = vsub.s32 %v1236, %v1238
        %v1240 = vrot.slane %v1232, %v1239
        %v1242 = vunpack.c.l.s4 1934713408
        %v1243 = vunpack.c.0.s8 %v1242
        %v1244 = vlaneseq
        %v1245 = vshrl.u32 %v1244, 7
        %v1246 = vsub.s32 %v1243, %v1245
        %v1247 = vrot.slane %v1233, %v1246
        %v1248 = vcombine.low %v1224, %v1240
        %v1249 = vcombine.high %v1224, %v1240
        %v1250 = vcombine.low %v1231, %v1247
        %v1251 = vcombine.high %v1231, %v1247
        %v1252 = vpack.c.bf16 %v952, %v952
        %v1253 = vpack.c.bf16 %v953, %v953
        %v1254 = vpack.c.bf16 %v954, %v954
        %v1255 = vpack.c.bf16 %v955, %v955
        %v1256 = vpack.c.bf16 %v1100, %v1100
        %v1257 = vpack.c.bf16 %v1101, %v1101
        %v1258 = vpack.c.bf16 %v1102, %v1102
        %v1259 = vpack.c.bf16 %v1103, %v1103
        %vm1260 = vcmask 64512
        %v1262 = vsel %vm1260, %v1252, 0
        %v1265 = vsel %vm1260, %v1256, 0
        %1267 = vmatprep.subr.bf16.mxu0 0
        %1268 = vmatpush1.bf16.xpose.msra.mxu0 %v1265
        %1269 = vmatprep.subr.bf16.mxu0 0
        %1270 = vmatpush1.bf16.xpose.msra.mxu0 0
        %1271 = vmatprep.subr.bf16.mxu0 0
        %1272 = vmatpush1.bf16.xpose.msra.mxu0 0
        %1273 = vmatprep.subr.bf16.mxu0 0
        %1274 = vmatpush1.bf16.xpose.msra.mxu0 0
        %1275 = vmatprep.subr.bf16.mxu0 0
        %1276 = vmatpush1.bf16.xpose.msra.mxu0 0
        %1277 = vmatprep.subr.bf16.mxu0 0
        %1278 = vmatpush1.bf16.xpose.msra.mxu0 0
        %1279 = vmatprep.subr.bf16.mxu0 0
        %1280 = vmatpush1.bf16.xpose.msra.mxu0 0
        %1281 = vmatprep.subr.bf16.mxu0 0
        %1282 = vmatpush1.bf16.xpose.msra.mxu0 0
        %1283 = vmatprep.subr.bf16.mxu0 0
        %1284 = vmatpush1.bf16.xpose.msra.mxu0 0
        %1285 = vmatprep.subr.bf16.mxu0 0
        %1286 = vmatpush1.bf16.xpose.msra.mxu0 0
        %1287 = vmatprep.subr.bf16.mxu0 0
        %1288 = vmatpush1.bf16.xpose.msra.mxu0 0
        %1289 = vmatprep.subr.bf16.mxu0 0
        %1290 = vmatpush1.bf16.xpose.msra.mxu0 0
        %1291 = vmatprep.subr.bf16.mxu0 0
        %1292 = vmatpush1.bf16.xpose.msra.mxu0 0
        %1293 = vmatprep.subr.bf16.mxu0 0
        %1294 = vmatpush1.bf16.xpose.msra.mxu0 0
        %1295 = vmatprep.subr.bf16.mxu0 0
        %1296 = vmatpush1.bf16.xpose.msra.mxu0 0
        %1297 = vmatprep.subr.bf16.mxu0 0
        %1298 = vmatpush1.bf16.xpose.msra.mxu0 0
        %1299 = vmatprep.mubr.bf16.mxu0 0
        %1300 = vmatmul.mubr.bf16.gmra.mrb[0].mxu0 %v1262
        %v1301 = vpop.f32.mrb[0].mxu0
        %v1302 = vadd.f32 0.0, %v1301
        %v1303 = vpop.f32.mrb[0].mxu0
        %v1304 = vpop.f32.mrb[0].mxu0
        %v1305 = vpop.f32.mrb[0].mxu0
        %1306 = vdwg.mxu0
        %v1308 = vsel %vm1260, %v1253, 0
        %v1311 = vsel %vm1260, %v1257, 0
        %1313 = vmatprep.subr.bf16.mxu0 0
        %1314 = vmatpush1.bf16.xpose.msra.mxu0 %v1311
        %1315 = vmatprep.subr.bf16.mxu0 0
        %1316 = vmatpush1.bf16.xpose.msra.mxu0 0
        %1317 = vmatprep.subr.bf16.mxu0 0
        %1318 = vmatpush1.bf16.xpose.msra.mxu0 0
        %1319 = vmatprep.subr.bf16.mxu0 0
        %1320 = vmatpush1.bf16.xpose.msra.mxu0 0
        %1321 = vmatprep.subr.bf16.mxu0 0
        %1322 = vmatpush1.bf16.xpose.msra.mxu0 0
        %1323 = vmatprep.subr.bf16.mxu0 0
        %1324 = vmatpush1.bf16.xpose.msra.mxu0 0
        %1325 = vmatprep.subr.bf16.mxu0 0
        %1326 = vmatpush1.bf16.xpose.msra.mxu0 0
        %1327 = vmatprep.subr.bf16.mxu0 0
        %1328 = vmatpush1.bf16.xpose.msra.mxu0 0
        %1329 = vmatprep.subr.bf16.mxu0 0
        %1330 = vmatpush1.bf16.xpose.msra.mxu0 0
        %1331 = vmatprep.subr.bf16.mxu0 0
        %1332 = vmatpush1.bf16.xpose.msra.mxu0 0
        %1333 = vmatprep.subr.bf16.mxu0 0
        %1334 = vmatpush1.bf16.xpose.msra.mxu0 0
        %1335 = vmatprep.subr.bf16.mxu0 0
        %1336 = vmatpush1.bf16.xpose.msra.mxu0 0
        %1337 = vmatprep.subr.bf16.mxu0 0
        %1338 = vmatpush1.bf16.xpose.msra.mxu0 0
        %1339 = vmatprep.subr.bf16.mxu0 0
        %1340 = vmatpush1.bf16.xpose.msra.mxu0 0
        %1341 = vmatprep.subr.bf16.mxu0 0
        %1342 = vmatpush1.bf16.xpose.msra.mxu0 0
        %1343 = vmatprep.subr.bf16.mxu0 0
        %1344 = vmatpush1.bf16.xpose.msra.mxu0 0
        %1345 = vmatprep.mubr.bf16.mxu0 0
        %1346 = vmatmul.mubr.bf16.gmra.mrb[0].mxu0 %v1308
        %v1347 = vpop.f32.mrb[0].mxu0
        %v1348 = vadd.f32 0.0, %v1347
        %v1349 = vpop.f32.mrb[0].mxu0
        %v1350 = vpop.f32.mrb[0].mxu0
        %v1351 = vpop.f32.mrb[0].mxu0
        %1352 = vdwg.mxu0
        %v1354 = vsel %vm1260, %v1254, 0
        %v1357 = vsel %vm1260, %v1258, 0
        %1359 = vmatprep.subr.bf16.mxu0 0
        %1360 = vmatpush1.bf16.xpose.msra.mxu0 %v1357
        %1361 = vmatprep.subr.bf16.mxu0 0
        %1362 = vmatpush1.bf16.xpose.msra.mxu0 0
        %1363 = vmatprep.subr.bf16.mxu0 0
        %1364 = vmatpush1.bf16.xpose.msra.mxu0 0
        %1365 = vmatprep.subr.bf16.mxu0 0
        %1366 = vmatpush1.bf16.xpose.msra.mxu0 0
        %1367 = vmatprep.subr.bf16.mxu0 0
        %1368 = vmatpush1.bf16.xpose.msra.mxu0 0
        %1369 = vmatprep.subr.bf16.mxu0 0
        %1370 = vmatpush1.bf16.xpose.msra.mxu0 0
        %1371 = vmatprep.subr.bf16.mxu0 0
        %1372 = vmatpush1.bf16.xpose.msra.mxu0 0
        %1373 = vmatprep.subr.bf16.mxu0 0
        %1374 = vmatpush1.bf16.xpose.msra.mxu0 0
        %1375 = vmatprep.subr.bf16.mxu0 0
        %1376 = vmatpush1.bf16.xpose.msra.mxu0 0
        %1377 = vmatprep.subr.bf16.mxu0 0
        %1378 = vmatpush1.bf16.xpose.msra.mxu0 0
        %1379 = vmatprep.subr.bf16.mxu0 0
        %1380 = vmatpush1.bf16.xpose.msra.mxu0 0
        %1381 = vmatprep.subr.bf16.mxu0 0
        %1382 = vmatpush1.bf16.xpose.msra.mxu0 0
        %1383 = vmatprep.subr.bf16.mxu0 0
        %1384 = vmatpush1.bf16.xpose.msra.mxu0 0
        %1385 = vmatprep.subr.bf16.mxu0 0
        %1386 = vmatpush1.bf16.xpose.msra.mxu0 0
        %1387 = vmatprep.subr.bf16.mxu0 0
        %1388 = vmatpush1.bf16.xpose.msra.mxu0 0
        %1389 = vmatprep.subr.bf16.mxu0 0
        %1390 = vmatpush1.bf16.xpose.msra.mxu0 0
        %1391 = vmatprep.mubr.bf16.mxu0 0
        %1392 = vmatmul.mubr.bf16.gmra.mrb[0].mxu0 %v1354
        %v1393 = vpop.f32.mrb[0].mxu0
        %v1394 = vadd.f32 0.0, %v1393
        %v1395 = vpop.f32.mrb[0].mxu0
        %v1396 = vpop.f32.mrb[0].mxu0
        %v1397 = vpop.f32.mrb[0].mxu0
        %1398 = vdwg.mxu0
        %v1400 = vsel %vm1260, %v1255, 0
        %v1403 = vsel %vm1260, %v1259, 0
        %1405 = vmatprep.subr.bf16.mxu0 0
        %1406 = vmatpush1.bf16.xpose.msra.mxu0 %v1403
        %1407 = vmatprep.subr.bf16.mxu0 0
        %1408 = vmatpush1.bf16.xpose.msra.mxu0 0
        %1409 = vmatprep.subr.bf16.mxu0 0
        %1410 = vmatpush1.bf16.xpose.msra.mxu0 0
        %1411 = vmatprep.subr.bf16.mxu0 0
        %1412 = vmatpush1.bf16.xpose.msra.mxu0 0
        %1413 = vmatprep.subr.bf16.mxu0 0
        %1414 = vmatpush1.bf16.xpose.msra.mxu0 0
        %1415 = vmatprep.subr.bf16.mxu0 0
        %1416 = vmatpush1.bf16.xpose.msra.mxu0 0
        %1417 = vmatprep.subr.bf16.mxu0 0
        %1418 = vmatpush1.bf16.xpose.msra.mxu0 0
        %1419 = vmatprep.subr.bf16.mxu0 0
        %1420 = vmatpush1.bf16.xpose.msra.mxu0 0
        %1421 = vmatprep.subr.bf16.mxu0 0
        %1422 = vmatpush1.bf16.xpose.msra.mxu0 0
        %1423 = vmatprep.subr.bf16.mxu0 0
        %1424 = vmatpush1.bf16.xpose.msra.mxu0 0
        %1425 = vmatprep.subr.bf16.mxu0 0
        %1426 = vmatpush1.bf16.xpose.msra.mxu0 0
        %1427 = vmatprep.subr.bf16.mxu0 0
        %1428 = vmatpush1.bf16.xpose.msra.mxu0 0
        %1429 = vmatprep.subr.bf16.mxu0 0
        %1430 = vmatpush1.bf16.xpose.msra.mxu0 0
        %1431 = vmatprep.subr.bf16.mxu0 0
        %1432 = vmatpush1.bf16.xpose.msra.mxu0 0
        %1433 = vmatprep.subr.bf16.mxu0 0
        %1434 = vmatpush1.bf16.xpose.msra.mxu0 0
        %1435 = vmatprep.subr.bf16.mxu0 0
        %1436 = vmatpush1.bf16.xpose.msra.mxu0 0
        %1437 = vmatprep.mubr.bf16.mxu0 0
        %1438 = vmatmul.mubr.bf16.gmra.mrb[0].mxu0 %v1400
        %v1439 = vpop.f32.mrb[0].mxu0
        %v1440 = vadd.f32 0.0, %v1439
        %v1441 = vpop.f32.mrb[0].mxu0
        %v1442 = vpop.f32.mrb[0].mxu0
        %v1443 = vpop.f32.mrb[0].mxu0
        %1444 = vdwg.mxu0
        %v1445 = vsel %vm1260, %v1302, -inf
        %1446 = vmax.xlane.f32.xlu0 %v1445
        %v1447 = vpop.xlane.xlu0 %1446
        %v1448 = vsel %vm1260, %v1348, -inf
        %1449 = vmax.xlane.f32.xlu0 %v1448
        %v1450 = vpop.xlane.xlu0 %1449
        %v1451 = vsel %vm1260, %v1394, -inf
        %1452 = vmax.xlane.f32.xlu0 %v1451
        %v1453 = vpop.xlane.xlu0 %1452
        %v1454 = vsel %vm1260, %v1440, -inf
        %1455 = vmax.xlane.f32.xlu0 %v1454
        %v1456 = vpop.xlane.xlu0 %1455
        %v1457 = vsub.f32 %v1302, %v1447
        %v1458 = vsub.f32 %v1348, %v1450
        %v1459 = vsub.f32 %v1394, %v1453
        %v1460 = vsub.f32 %v1440, %v1456
        %v1461 = vmul.f32 %v1457, 1.442695
        %v1462 = vpow.pop %v1461
        %v1463 = vmul.f32 %v1458, 1.442695
        %v1464 = vpow.pop %v1463
        %v1465 = vmul.f32 %v1459, 1.442695
        %v1466 = vpow.pop %v1465
        %v1467 = vmul.f32 %v1460, 1.442695
        %v1468 = vpow.pop %v1467
        %v1469 = vsel %vm1260, %v1462, 0.0
        %1470 = vadd.xlane.f32.xlu0 %v1469
        %v1471 = vpop.xlane.xlu0 %1470
        %v1472 = vsel %vm1260, %v1464, 0.0
        %1473 = vadd.xlane.f32.xlu0 %v1472
        %v1474 = vpop.xlane.xlu0 %1473
        %v1475 = vsel %vm1260, %v1466, 0.0
        %1476 = vadd.xlane.f32.xlu0 %v1475
        %v1477 = vpop.xlane.xlu0 %1476
        %v1478 = vsel %vm1260, %v1468, 0.0
        %1479 = vadd.xlane.f32.xlu0 %v1478
        %v1480 = vpop.xlane.xlu0 %1479
        %v1481 = vrcp.pop %v1471
        %v1482 = vrcp.pop %v1474
        %v1483 = vrcp.pop %v1477
        %v1484 = vrcp.pop %v1480
        %v1485 = vmul.f32 %v1462, %v1481
        %v1486 = vmul.f32 %v1464, %v1482
        %v1487 = vmul.f32 %v1466, %v1483
        %v1488 = vmul.f32 %v1468, %v1484
        %v1489 = vpack.c.bf16 %v1485, %v1485
        %v1490 = vpack.c.bf16 %v1486, %v1486
        %v1491 = vpack.c.bf16 %v1487, %v1487
        %v1492 = vpack.c.bf16 %v1488, %v1488
        %v1493 = vpack.c.bf16 %v1248, %v1248
        %v1494 = vpack.c.bf16 %v1249, %v1249
        %v1495 = vpack.c.bf16 %v1250, %v1250
        %v1496 = vpack.c.bf16 %v1251, %v1251
        %v1498 = vsel %vm1260, %v1489, 0
        %vm1500 = vcmask 1043456
        %v1502 = vsel %vm1500, %v1493, 0
        %1504 = vmatprep.subr.bf16.mxu0 0
        %1505 = vmatpush1.bf16.msra.mxu0 %v1502
        %1506 = vmatprep.subr.bf16.mxu0 0
        %1507 = vmatpush1.bf16.msra.mxu0 0
        %1508 = vmatprep.subr.bf16.mxu0 0
        %1509 = vmatpush1.bf16.msra.mxu0 0
        %1510 = vmatprep.subr.bf16.mxu0 0
        %1511 = vmatpush1.bf16.msra.mxu0 0
        %1512 = vmatprep.subr.bf16.mxu0 0
        %1513 = vmatpush1.bf16.msra.mxu0 0
        %1514 = vmatprep.subr.bf16.mxu0 0
        %1515 = vmatpush1.bf16.msra.mxu0 0
        %1516 = vmatprep.subr.bf16.mxu0 0
        %1517 = vmatpush1.bf16.msra.mxu0 0
        %1518 = vmatprep.subr.bf16.mxu0 0
        %1519 = vmatpush1.bf16.msra.mxu0 0
        %1520 = vmatprep.subr.bf16.mxu0 0
        %1521 = vmatpush1.bf16.msra.mxu0 0
        %1522 = vmatprep.subr.bf16.mxu0 0
        %1523 = vmatpush1.bf16.msra.mxu0 0
        %1524 = vmatprep.subr.bf16.mxu0 0
        %1525 = vmatpush1.bf16.msra.mxu0 0
        %1526 = vmatprep.subr.bf16.mxu0 0
        %1527 = vmatpush1.bf16.msra.mxu0 0
        %1528 = vmatprep.subr.bf16.mxu0 0
        %1529 = vmatpush1.bf16.msra.mxu0 0
        %1530 = vmatprep.subr.bf16.mxu0 0
        %1531 = vmatpush1.bf16.msra.mxu0 0
        %1532 = vmatprep.subr.bf16.mxu0 0
        %1533 = vmatpush1.bf16.msra.mxu0 0
        %1534 = vmatprep.subr.bf16.mxu0 0
        %1535 = vmatpush1.bf16.msra.mxu0 0
        %1536 = vmatprep.mubr.bf16.mxu0 0
        %1537 = vmatmul.mubr.bf16.gmra.mrb[0].mxu0 %v1498
        %v1538 = vpop.f32.mrb[0].mxu0
        %v1539 = vadd.f32 0.0, %v1538
        %v1540 = vpop.f32.mrb[0].mxu0
        %v1541 = vpop.f32.mrb[0].mxu0
        %v1542 = vpop.f32.mrb[0].mxu0
        %1543 = vdwg.mxu0
        %v1545 = vsel %vm1260, %v1490, 0
        %v1548 = vsel %vm1500, %v1494, 0
        %1550 = vmatprep.subr.bf16.mxu0 0
        %1551 = vmatpush1.bf16.msra.mxu0 %v1548
        %1552 = vmatprep.subr.bf16.mxu0 0
        %1553 = vmatpush1.bf16.msra.mxu0 0
        %1554 = vmatprep.subr.bf16.mxu0 0
        %1555 = vmatpush1.bf16.msra.mxu0 0
        %1556 = vmatprep.subr.bf16.mxu0 0
        %1557 = vmatpush1.bf16.msra.mxu0 0
        %1558 = vmatprep.subr.bf16.mxu0 0
        %1559 = vmatpush1.bf16.msra.mxu0 0
        %1560 = vmatprep.subr.bf16.mxu0 0
        %1561 = vmatpush1.bf16.msra.mxu0 0
        %1562 = vmatprep.subr.bf16.mxu0 0
        %1563 = vmatpush1.bf16.msra.mxu0 0
        %1564 = vmatprep.subr.bf16.mxu0 0
        %1565 = vmatpush1.bf16.msra.mxu0 0
        %1566 = vmatprep.subr.bf16.mxu0 0
        %1567 = vmatpush1.bf16.msra.mxu0 0
        %1568 = vmatprep.subr.bf16.mxu0 0
        %1569 = vmatpush1.bf16.msra.mxu0 0
        %1570 = vmatprep.subr.bf16.mxu0 0
        %1571 = vmatpush1.bf16.msra.mxu0 0
        %1572 = vmatprep.subr.bf16.mxu0 0
        %1573 = vmatpush1.bf16.msra.mxu0 0
        %1574 = vmatprep.subr.bf16.mxu0 0
        %1575 = vmatpush1.bf16.msra.mxu0 0
        %1576 = vmatprep.subr.bf16.mxu0 0
        %1577 = vmatpush1.bf16.msra.mxu0 0
        %1578 = vmatprep.subr.bf16.mxu0 0
        %1579 = vmatpush1.bf16.msra.mxu0 0
        %1580 = vmatprep.subr.bf16.mxu0 0
        %1581 = vmatpush1.bf16.msra.mxu0 0
        %1582 = vmatprep.mubr.bf16.mxu0 0
        %1583 = vmatmul.mubr.bf16.gmra.mrb[0].mxu0 %v1545
        %v1584 = vpop.f32.mrb[0].mxu0
        %v1585 = vadd.f32 0.0, %v1584
        %v1586 = vpop.f32.mrb[0].mxu0
        %v1587 = vpop.f32.mrb[0].mxu0
        %v1588 = vpop.f32.mrb[0].mxu0
        %1589 = vdwg.mxu0
        %v1591 = vsel %vm1260, %v1491, 0
        %v1594 = vsel %vm1500, %v1495, 0
        %1596 = vmatprep.subr.bf16.mxu0 0
        %1597 = vmatpush1.bf16.msra.mxu0 %v1594
        %1598 = vmatprep.subr.bf16.mxu0 0
        %1599 = vmatpush1.bf16.msra.mxu0 0
        %1600 = vmatprep.subr.bf16.mxu0 0
        %1601 = vmatpush1.bf16.msra.mxu0 0
        %1602 = vmatprep.subr.bf16.mxu0 0
        %1603 = vmatpush1.bf16.msra.mxu0 0
        %1604 = vmatprep.subr.bf16.mxu0 0
        %1605 = vmatpush1.bf16.msra.mxu0 0
        %1606 = vmatprep.subr.bf16.mxu0 0
        %1607 = vmatpush1.bf16.msra.mxu0 0
        %1608 = vmatprep.subr.bf16.mxu0 0
        %1609 = vmatpush1.bf16.msra.mxu0 0
        %1610 = vmatprep.subr.bf16.mxu0 0
        %1611 = vmatpush1.bf16.msra.mxu0 0
        %1612 = vmatprep.subr.bf16.mxu0 0
        %1613 = vmatpush1.bf16.msra.mxu0 0
        %1614 = vmatprep.subr.bf16.mxu0 0
        %1615 = vmatpush1.bf16.msra.mxu0 0
        %1616 = vmatprep.subr.bf16.mxu0 0
        %1617 = vmatpush1.bf16.msra.mxu0 0
        %1618 = vmatprep.subr.bf16.mxu0 0
        %1619 = vmatpush1.bf16.msra.mxu0 0
        %1620 = vmatprep.subr.bf16.mxu0 0
        %1621 = vmatpush1.bf16.msra.mxu0 0
        %1622 = vmatprep.subr.bf16.mxu0 0
        %1623 = vmatpush1.bf16.msra.mxu0 0
        %1624 = vmatprep.subr.bf16.mxu0 0
        %1625 = vmatpush1.bf16.msra.mxu0 0
        %1626 = vmatprep.subr.bf16.mxu0 0
        %1627 = vmatpush1.bf16.msra.mxu0 0
        %1628 = vmatprep.mubr.bf16.mxu0 0
        %1629 = vmatmul.mubr.bf16.gmra.mrb[0].mxu0 %v1591
        %v1630 = vpop.f32.mrb[0].mxu0
        %v1631 = vadd.f32 0.0, %v1630
        %v1632 = vpop.f32.mrb[0].mxu0
        %v1633 = vpop.f32.mrb[0].mxu0
        %v1634 = vpop.f32.mrb[0].mxu0
        %1635 = vdwg.mxu0
        %v1637 = vsel %vm1260, %v1492, 0
        %v1640 = vsel %vm1500, %v1496, 0
        %1642 = vmatprep.subr.bf16.mxu0 0
        %1643 = vmatpush1.bf16.msra.mxu0 %v1640
        %1644 = vmatprep.subr.bf16.mxu0 0
        %1645 = vmatpush1.bf16.msra.mxu0 0
        %1646 = vmatprep.subr.bf16.mxu0 0
        %1647 = vmatpush1.bf16.msra.mxu0 0
        %1648 = vmatprep.subr.bf16.mxu0 0
        %1649 = vmatpush1.bf16.msra.mxu0 0
        %1650 = vmatprep.subr.bf16.mxu0 0
        %1651 = vmatpush1.bf16.msra.mxu0 0
        %1652 = vmatprep.subr.bf16.mxu0 0
        %1653 = vmatpush1.bf16.msra.mxu0 0
        %1654 = vmatprep.subr.bf16.mxu0 0
        %1655 = vmatpush1.bf16.msra.mxu0 0
        %1656 = vmatprep.subr.bf16.mxu0 0
        %1657 = vmatpush1.bf16.msra.mxu0 0
        %1658 = vmatprep.subr.bf16.mxu0 0
        %1659 = vmatpush1.bf16.msra.mxu0 0
        %1660 = vmatprep.subr.bf16.mxu0 0
        %1661 = vmatpush1.bf16.msra.mxu0 0
        %1662 = vmatprep.subr.bf16.mxu0 0
        %1663 = vmatpush1.bf16.msra.mxu0 0
        %1664 = vmatprep.subr.bf16.mxu0 0
        %1665 = vmatpush1.bf16.msra.mxu0 0
        %1666 = vmatprep.subr.bf16.mxu0 0
        %1667 = vmatpush1.bf16.msra.mxu0 0
        %1668 = vmatprep.subr.bf16.mxu0 0
        %1669 = vmatpush1.bf16.msra.mxu0 0
        %1670 = vmatprep.subr.bf16.mxu0 0
        %1671 = vmatpush1.bf16.msra.mxu0 0
        %1672 = vmatprep.subr.bf16.mxu0 0
        %1673 = vmatpush1.bf16.msra.mxu0 0
        %1674 = vmatprep.mubr.bf16.mxu0 0
        %1675 = vmatmul.mubr.bf16.gmra.mrb[0].mxu0 %v1637
        %v1676 = vpop.f32.mrb[0].mxu0
        %v1677 = vadd.f32 0.0, %v1676
        %v1678 = vpop.f32.mrb[0].mxu0
        %v1679 = vpop.f32.mrb[0].mxu0
        %v1680 = vpop.f32.mrb[0].mxu0
        %1681 = vdwg.mxu0
        %v1682 = vcombine.low %v1539, %v1631
        %v1683 = vcombine.high %v1539, %v1631
        %v1685 = vunpack.c.l.s4 1983009808
        %v1686 = vunpack.c.0.s8 %v1685
        %v1687 = vlaneseq
        %v1688 = vshrl.u32 %v1687, 7
        %v1689 = vsub.s32 %v1686, %v1688
        %v1690 = vrot.slane %v1682, %v1689
        %v1692 = vunpack.c.l.s4 1983009808
        %v1693 = vunpack.c.0.s8 %v1692
        %v1694 = vlaneseq
        %v1695 = vshrl.u32 %v1694, 7
        %v1696 = vsub.s32 %v1693, %v1695
        %v1697 = vrot.slane %v1683, %v1696
        %v1698 = vcombine.low %v1585, %v1677
        %v1699 = vcombine.high %v1585, %v1677
        %v1701 = vunpack.c.l.s4 1983009808
        %v1702 = vunpack.c.0.s8 %v1701
        %v1703 = vlaneseq
        %v1704 = vshrl.u32 %v1703, 7
        %v1705 = vsub.s32 %v1702, %v1704
        %v1706 = vrot.slane %v1698, %v1705
        %v1708 = vunpack.c.l.s4 1983009808
        %v1709 = vunpack.c.0.s8 %v1708
        %v1710 = vlaneseq
        %v1711 = vshrl.u32 %v1710, 7
        %v1712 = vsub.s32 %v1709, %v1711
        %v1713 = vrot.slane %v1699, %v1712
        %v1714 = vcombine.low %v1690, %v1706
        %v1715 = vcombine.high %v1690, %v1706
        %v1717 = vunpack.c.l.s4 1934713408
        %v1718 = vunpack.c.0.s8 %v1717
        %v1719 = vlaneseq
        %v1720 = vshrl.u32 %v1719, 7
        %v1721 = vsub.s32 %v1718, %v1720
        %v1722 = vrot.slane %v1714, %v1721
        %v1724 = vunpack.c.l.s4 1934713408
        %v1725 = vunpack.c.0.s8 %v1724
        %v1726 = vlaneseq
        %v1727 = vshrl.u32 %v1726, 7
        %v1728 = vsub.s32 %v1725, %v1727
        %v1729 = vrot.slane %v1715, %v1728
        %v1730 = vcombine.low %v1697, %v1713
        %v1731 = vcombine.high %v1697, %v1713
        %v1733 = vunpack.c.l.s4 1934713408
        %v1734 = vunpack.c.0.s8 %v1733
        %v1735 = vlaneseq
        %v1736 = vshrl.u32 %v1735, 7
        %v1737 = vsub.s32 %v1734, %v1736
        %v1738 = vrot.slane %v1730, %v1737
        %v1740 = vunpack.c.l.s4 1934713408
        %v1741 = vunpack.c.0.s8 %v1740
        %v1742 = vlaneseq
        %v1743 = vshrl.u32 %v1742, 7
        %v1744 = vsub.s32 %v1741, %v1743
        %v1745 = vrot.slane %v1731, %v1744
        %v1746 = vcombine.high %v1722, 0.0
        %v1747 = vcombine.high %v1729, 0.0
        %v1748 = vcombine.high %v1738, 0.0
        %v1749 = vcombine.high %v1745, 0.0
        %v1750 = vcombine.low %v1722, %v1729
        %v1752 = vunpack.c.l.s4 1983009808
        %v1753 = vunpack.c.0.s8 %v1752
        %v1754 = vlaneseq
        %v1755 = vshrl.u32 %v1754, 7
        %v1756 = vsub.s32 %v1753, %v1755
        %v1757 = vrot.slane %v1750, %v1756
        %v1758 = vcombine.low %v1746, %v1747
        %v1760 = vunpack.c.l.s4 1983009808
        %v1761 = vunpack.c.0.s8 %v1760
        %v1762 = vlaneseq
        %v1763 = vshrl.u32 %v1762, 7
        %v1764 = vsub.s32 %v1761, %v1763
        %v1765 = vrot.slane %v1758, %v1764
        %v1766 = vcombine.low %v1738, %v1745
        %v1768 = vunpack.c.l.s4 1983009808
        %v1769 = vunpack.c.0.s8 %v1768
        %v1770 = vlaneseq
        %v1771 = vshrl.u32 %v1770, 7
        %v1772 = vsub.s32 %v1769, %v1771
        %v1773 = vrot.slane %v1766, %v1772
        %v1774 = vcombine.low %v1748, %v1749
        %v1776 = vunpack.c.l.s4 1983009808
        %v1777 = vunpack.c.0.s8 %v1776
        %v1778 = vlaneseq
        %v1779 = vshrl.u32 %v1778, 7
        %v1780 = vsub.s32 %v1777, %v1779
        %v1781 = vrot.slane %v1774, %v1780
        %v1782 = vcombine.low %v1757, %v1765
        %v1783 = vcombine.high %v1757, %v1765
        %v1785 = vunpack.c.l.s4 1934713408
        %v1786 = vunpack.c.0.s8 %v1785
        %v1787 = vlaneseq
        %v1788 = vshrl.u32 %v1787, 7
        %v1789 = vsub.s32 %v1786, %v1788
        %v1790 = vrot.slane %v1782, %v1789
        %v1792 = vunpack.c.l.s4 1934713408
        %v1793 = vunpack.c.0.s8 %v1792
        %v1794 = vlaneseq
        %v1795 = vshrl.u32 %v1794, 7
        %v1796 = vsub.s32 %v1793, %v1795
        %v1797 = vrot.slane %v1783, %v1796
        %v1798 = vcombine.low %v1773, %v1781
        %v1799 = vcombine.high %v1773, %v1781
        %v1801 = vunpack.c.l.s4 1934713408
        %v1802 = vunpack.c.0.s8 %v1801
        %v1803 = vlaneseq
        %v1804 = vshrl.u32 %v1803, 7
        %v1805 = vsub.s32 %v1802, %v1804
        %v1806 = vrot.slane %v1798, %v1805
        %v1808 = vunpack.c.l.s4 1934713408
        %v1809 = vunpack.c.0.s8 %v1808
        %v1810 = vlaneseq
        %v1811 = vshrl.u32 %v1810, 7
        %v1812 = vsub.s32 %v1809, %v1811
        %v1813 = vrot.slane %v1799, %v1812
        %v1814 = vcombine.low %v1790, %v1806
        %v1815 = vcombine.high %v1790, %v1806
        %v1816 = vcombine.low %v1797, %v1813
        %v1817 = vcombine.high %v1797, %v1813
        %1819 = vrot.lane.b32.xlu0 %v1815, 8
        %v1820 = vpop.permute.xlu0 %1819
        %1823 = vrot.lane.b32.xlu0 %v1816, 16
        %v1824 = vpop.permute.xlu0 %1823
        %1827 = vrot.lane.b32.xlu0 %v1817, 24
        %v1828 = vpop.permute.xlu0 %1827
        %v1830 = vsel %vm1260, %v1814, %v1820
        %vm1831 = vcmask 130048
        %v1832 = vsel %vm1831, %v1830, %v1824
        %vm1833 = vcmask 195584
        %v1834 = vsel %vm1833, %v1832, %v1828
        %v1835 = vpack.c.bf16 %v1834, %v1834
        %v1836 = vld [vmem:[%s704] sm:$0xf]
        %v1837 = vld [vmem:[%s704 + $0x4] sm:$0xf]
        %v1838 = vld [vmem:[%s704 + $0x8] sm:$0xf]
        %v1839 = vld [vmem:[%s704 + $0xc] sm:$0xf]
        %v1840 = vld [vmem:[%s601] sm:$0x1]
        %v1842 = vlaneseq
        %v1843 = vshrl.u32 %v1842, 7
        %v1844 = vsub.s32 0, %v1843
        %v1845 = vrot.slane %v1840, %v1844
        %v1851 = vunpack.c.l.b16 %v1836
        %v1852 = vunpack.c.l.b16 %v1837
        %v1853 = vunpack.c.l.b16 %v1838
        %v1854 = vunpack.c.l.b16 %v1839
        %v1855 = vpack.c.b16 %v1852, %v1851
        %v1856 = vpack.c.b16 %v1854, %v1853
        %v1860 = vsel %vm766, %v1835, 0
        %1862 = vmatprep.subr.bf16.mxu0 0
        %1863 = vmatpush1.bf16.msra.mxu0 %v1855
        %1864 = vmatprep.subr.bf16.mxu0 0
        %1865 = vmatpush1.bf16.msra.mxu0 %v1856
        %1866 = vmatprep.subr.bf16.mxu0 0
        %1867 = vmatpush1.bf16.msra.mxu0 0
        %1868 = vmatprep.subr.bf16.mxu0 0
        %1869 = vmatpush1.bf16.msra.mxu0 0
        %1870 = vmatprep.subr.bf16.mxu0 0
        %1871 = vmatpush1.bf16.msra.mxu0 0
        %1872 = vmatprep.subr.bf16.mxu0 0
        %1873 = vmatpush1.bf16.msra.mxu0 0
        %1874 = vmatprep.subr.bf16.mxu0 0
        %1875 = vmatpush1.bf16.msra.mxu0 0
        %1876 = vmatprep.subr.bf16.mxu0 0
        %1877 = vmatpush1.bf16.msra.mxu0 0
        %1878 = vmatprep.subr.bf16.mxu0 0
        %1879 = vmatpush1.bf16.msra.mxu0 0
        %1880 = vmatprep.subr.bf16.mxu0 0
        %1881 = vmatpush1.bf16.msra.mxu0 0
        %1882 = vmatprep.subr.bf16.mxu0 0
        %1883 = vmatpush1.bf16.msra.mxu0 0
        %1884 = vmatprep.subr.bf16.mxu0 0
        %1885 = vmatpush1.bf16.msra.mxu0 0
        %1886 = vmatprep.subr.bf16.mxu0 0
        %1887 = vmatpush1.bf16.msra.mxu0 0
        %1888 = vmatprep.subr.bf16.mxu0 0
        %1889 = vmatpush1.bf16.msra.mxu0 0
        %1890 = vmatprep.subr.bf16.mxu0 0
        %1891 = vmatpush1.bf16.msra.mxu0 0
        %1892 = vmatprep.subr.bf16.mxu0 0
        %1893 = vmatpush1.bf16.msra.mxu0 0
        %1894 = vmatprep.mubr.bf16.mxu0 0
        %1895 = vmatmul.mubr.bf16.gmra.mrb[0].mxu0 %v1860
        %v1896 = vpop.f32.mrb[0].mxu0
        %v1897 = vadd.f32 %v1845, %v1896
        %v1898 = vpop.f32.mrb[0].mxu0
        %v1899 = vpop.f32.mrb[0].mxu0
        %v1900 = vpop.f32.mrb[0].mxu0
        %1901 = vdwg.mxu0
        %v1902 = vadd.f32 %v741, %v1897
        %v1903 = vsel %vm766, %v1902, 0.0
        %1904 = vadd.xlane.f32.xlu0 %v1903
        %v1905 = vpop.xlane.xlu0 %1904
        %v1906 = vrcp.pop 32.0
        %v1907 = vmul.f32 %v1905, %v1906
        %v1908 = vsub.f32 %v1902, %v1907
        %v1909 = vmul.f32 %v1908, %v1908
        %v1910 = vsel %vm766, %v1909, 0.0
        %1911 = vadd.xlane.f32.xlu0 %v1910
        %v1912 = vpop.xlane.xlu0 %1911
        %v1913 = vmul.f32 %v1912, %v1906
        %v1914 = vadd.f32 %v1913, 1e-05
        %v1915 = vrsqrt.pop %v1914
        %v1916 = vmul.f32 %v1908, %v1915
        %v1917 = vld [vmem:[%s723] sm:$0x1]
        %v1919 = vlaneseq
        %v1920 = vshrl.u32 %v1919, 7
        %v1921 = vsub.s32 0, %v1920
        %v1922 = vrot.slane %v1917, %v1921
        %v1924 = vmul.f32 %v1916, %v1922
        %v1925 = vld [vmem:[%s726] sm:$0x1]
        %v1927 = vlaneseq
        %v1928 = vshrl.u32 %v1927, 7
        %v1929 = vsub.s32 0, %v1928
        %v1930 = vrot.slane %v1925, %v1929
        %v1932 = vadd.f32 %v1924, %v1930
        %v1933 = vpack.c.bf16 %v1932, %v1932
        %v1934 = vld [vmem:[%s709] sm:$0xf]
        %v1935 = vld [vmem:[%s709 + $0x4] sm:$0xf]
        %v1936 = vld [vmem:[%s709 + $0x8] sm:$0xf]
        %v1937 = vld [vmem:[%s709 + $0xc] sm:$0xf]
        %v1938 = vld [vmem:[%s712] sm:$0x1]
        %v1940 = vlaneseq
        %v1941 = vshrl.u32 %v1940, 7
        %v1942 = vsub.s32 0, %v1941
        %v1943 = vrot.slane %v1938, %v1942
        %v1949 = vunpack.c.l.b16 %v1934
        %v1950 = vunpack.c.l.b16 %v1935
        %v1951 = vunpack.c.l.b16 %v1936
        %v1952 = vunpack.c.l.b16 %v1937
        %v1953 = vpack.c.b16 %v1950, %v1949
        %v1954 = vpack.c.b16 %v1952, %v1951
        %v1958 = vsel %vm766, %v1933, 0
        %1960 = vmatprep.subr.bf16.mxu0 0
        %1961 = vmatpush1.bf16.msra.mxu0 %v1953
        %1962 = vmatprep.subr.bf16.mxu0 0
        %1963 = vmatpush1.bf16.msra.mxu0 %v1954
        %1964 = vmatprep.subr.bf16.mxu0 0
        %1965 = vmatpush1.bf16.msra.mxu0 0
        %1966 = vmatprep.subr.bf16.mxu0 0
        %1967 = vmatpush1.bf16.msra.mxu0 0
        %1968 = vmatprep.subr.bf16.mxu0 0
        %1969 = vmatpush1.bf16.msra.mxu0 0
        %1970 = vmatprep.subr.bf16.mxu0 0
        %1971 = vmatpush1.bf16.msra.mxu0 0
        %1972 = vmatprep.subr.bf16.mxu0 0
        %1973 = vmatpush1.bf16.msra.mxu0 0
        %1974 = vmatprep.subr.bf16.mxu0 0
        %1975 = vmatpush1.bf16.msra.mxu0 0
        %1976 = vmatprep.subr.bf16.mxu0 0
        %1977 = vmatpush1.bf16.msra.mxu0 0
        %1978 = vmatprep.subr.bf16.mxu0 0
        %1979 = vmatpush1.bf16.msra.mxu0 0
        %1980 = vmatprep.subr.bf16.mxu0 0
        %1981 = vmatpush1.bf16.msra.mxu0 0
        %1982 = vmatprep.subr.bf16.mxu0 0
        %1983 = vmatpush1.bf16.msra.mxu0 0
        %1984 = vmatprep.subr.bf16.mxu0 0
        %1985 = vmatpush1.bf16.msra.mxu0 0
        %1986 = vmatprep.subr.bf16.mxu0 0
        %1987 = vmatpush1.bf16.msra.mxu0 0
        %1988 = vmatprep.subr.bf16.mxu0 0
        %1989 = vmatpush1.bf16.msra.mxu0 0
        %1990 = vmatprep.subr.bf16.mxu0 0
        %1991 = vmatpush1.bf16.msra.mxu0 0
        %1992 = vmatprep.mubr.bf16.mxu0 0
        %1993 = vmatmul.mubr.bf16.gmra.mrb[0].mxu0 %v1958
        %v1994 = vpop.f32.mrb[0].mxu0
        %v1995 = vadd.f32 %v1943, %v1994
        %v1996 = vpop.f32.mrb[0].mxu0
        %v1997 = vpop.f32.mrb[0].mxu0
        %v1998 = vpop.f32.mrb[0].mxu0
        %1999 = vdwg.mxu0
        %v2000 = vmax.f32 %v1995, 0.0
        %v2001 = vpack.c.bf16 %v2000, %v2000
        %v2002 = vld [vmem:[%s717] sm:$0xf]
        %v2003 = vld [vmem:[%s717 + $0x4] sm:$0xf]
        %v2004 = vld [vmem:[%s717 + $0x8] sm:$0xf]
        %v2005 = vld [vmem:[%s717 + $0xc] sm:$0xf]
        %v2006 = vld [vmem:[%s717 + $0x10] sm:$0xf]
        %v2007 = vld [vmem:[%s717 + $0x14] sm:$0xf]
        %v2008 = vld [vmem:[%s717 + $0x18] sm:$0xf]
        %v2009 = vld [vmem:[%s717 + $0x1c] sm:$0xf]
        %v2010 = vld [vmem:[%s720] sm:$0x1]
        %v2012 = vlaneseq
        %v2013 = vshrl.u32 %v2012, 7
        %v2014 = vsub.s32 0, %v2013
        %v2015 = vrot.slane %v2010, %v2014
        %v2025 = vunpack.c.l.b16 %v2002
        %v2026 = vunpack.c.l.b16 %v2003
        %v2027 = vunpack.c.l.b16 %v2004
        %v2028 = vunpack.c.l.b16 %v2005
        %v2029 = vunpack.c.l.b16 %v2006
        %v2030 = vunpack.c.l.b16 %v2007
        %v2031 = vunpack.c.l.b16 %v2008
        %v2032 = vunpack.c.l.b16 %v2009
        %v2033 = vpack.c.b16 %v2026, %v2025
        %v2034 = vpack.c.b16 %v2028, %v2027
        %v2035 = vpack.c.b16 %v2030, %v2029
        %v2036 = vpack.c.b16 %v2032, %v2031
        %vm2041 = vcmask 523264
        %v2043 = vsel %vm2041, %v2001, 0
        %2045 = vmatprep.subr.bf16.mxu0 0
        %2046 = vmatpush1.bf16.msra.mxu0 %v2033
        %2047 = vmatprep.subr.bf16.mxu0 0
        %2048 = vmatpush1.bf16.msra.mxu0 %v2034
        %2049 = vmatprep.subr.bf16.mxu0 0
        %2050 = vmatpush1.bf16.msra.mxu0 %v2035
        %2051 = vmatprep.subr.bf16.mxu0 0
        %2052 = vmatpush1.bf16.msra.mxu0 %v2036
        %2053 = vmatprep.subr.bf16.mxu0 0
        %2054 = vmatpush1.bf16.msra.mxu0 0
        %2055 = vmatprep.subr.bf16.mxu0 0
        %2056 = vmatpush1.bf16.msra.mxu0 0
        %2057 = vmatprep.subr.bf16.mxu0 0
        %2058 = vmatpush1.bf16.msra.mxu0 0
        %2059 = vmatprep.subr.bf16.mxu0 0
        %2060 = vmatpush1.bf16.msra.mxu0 0
        %2061 = vmatprep.subr.bf16.mxu0 0
        %2062 = vmatpush1.bf16.msra.mxu0 0
        %2063 = vmatprep.subr.bf16.mxu0 0
        %2064 = vmatpush1.bf16.msra.mxu0 0
        %2065 = vmatprep.subr.bf16.mxu0 0
        %2066 = vmatpush1.bf16.msra.mxu0 0
        %2067 = vmatprep.subr.bf16.mxu0 0
        %2068 = vmatpush1.bf16.msra.mxu0 0
        %2069 = vmatprep.subr.bf16.mxu0 0
        %2070 = vmatpush1.bf16.msra.mxu0 0
        %2071 = vmatprep.subr.bf16.mxu0 0
        %2072 = vmatpush1.bf16.msra.mxu0 0
        %2073 = vmatprep.subr.bf16.mxu0 0
        %2074 = vmatpush1.bf16.msra.mxu0 0
        %2075 = vmatprep.subr.bf16.mxu0 0
        %2076 = vmatpush1.bf16.msra.mxu0 0
        %2077 = vmatprep.mubr.bf16.mxu0 0
        %2078 = vmatmul.mubr.bf16.gmra.mrb[0].mxu0 %v2043
        %v2079 = vpop.f32.mrb[0].mxu0
        %v2080 = vadd.f32 %v2015, %v2079
        %v2081 = vpop.f32.mrb[0].mxu0
        %v2082 = vpop.f32.mrb[0].mxu0
        %v2083 = vpop.f32.mrb[0].mxu0
        %2084 = vdwg.mxu0
        %v2085 = vadd.f32 %v1932, %v2080
        %v2086 = vsel %vm766, %v2085, 0.0
        %2087 = vadd.xlane.f32.xlu0 %v2086
        %v2088 = vpop.xlane.xlu0 %2087
        %v2089 = vmul.f32 %v2088, %v1906
        %v2090 = vsub.f32 %v2085, %v2089
        %v2091 = vmul.f32 %v2090, %v2090
        %v2092 = vsel %vm766, %v2091, 0.0
        %2093 = vadd.xlane.f32.xlu0 %v2092
        %v2094 = vpop.xlane.xlu0 %2093
        %v2095 = vmul.f32 %v2094, %v1906
        %v2096 = vadd.f32 %v2095, 1e-05
        %v2097 = vrsqrt.pop %v2096
        %v2098 = vmul.f32 %v2090, %v2097
        %v2099 = vld [vmem:[%s729] sm:$0x1]
        %v2101 = vlaneseq
        %v2102 = vshrl.u32 %v2101, 7
        %v2103 = vsub.s32 0, %v2102
        %v2104 = vrot.slane %v2099, %v2103
        %v2106 = vmul.f32 %v2098, %v2104
        %v2107 = vld [vmem:[%s732] sm:$0x1]
        %v2109 = vlaneseq
        %v2110 = vshrl.u32 %v2109, 7
        %v2111 = vsub.s32 0, %v2110
        %v2112 = vrot.slane %v2107, %v2111
        %v2114 = vadd.f32 %v2106, %v2112
        %2115 = vst.msk [vmem:[#allocation2] sm:$0xff] %vm766, %v2114
        %p2116 = scmp.eq.s32.totalorder %s40, 1
        // Predicated region
        $region93: #{tpu_custom_call.1} parent=79 // pred_check
          %p2117 = pneg %p2116
        $region94: #{tpu_custom_call.1} parent=79 // pred_check_branch
          %2119 = sbr.rel (%p2117) target = $region96
        $region95: #{tpu_custom_call.1} parent=79 // pred_region
          %v2120 = vsel %vm766, %v2114, 0.0
          %v2121 = vrot.slane %v2120, 4
          %v2122 = vadd.f32 %v2120, %v2121
          %v2123 = vrot.slane %v2122, 2
          %v2124 = vadd.f32 %v2122, %v2123
          %v2125 = vrot.slane %v2124, 1
          %v2126 = vadd.f32 %v2124, %v2125
          %v2127 = vrcp.pop 8.0
          %v2128 = vmul.f32 %v2126, %v2127
          %v2129 = vpack.c.bf16 %v2128, %v2128
          %v2130 = vld [vmem:[%s13] sm:$0xf]
          %v2131 = vld [vmem:[%s13 + $0x4] sm:$0xf]
          %v2132 = vld [vmem:[%s13 + $0x8] sm:$0xf]
          %v2133 = vld [vmem:[%s13 + $0xc] sm:$0xf]
          %v2134 = vld [vmem:[%s14] sm:$0x1]
          %v2139 = vunpack.c.l.b16 %v2130
          %v2140 = vunpack.c.l.b16 %v2131
          %v2141 = vunpack.c.l.b16 %v2132
          %v2142 = vunpack.c.l.b16 %v2133
          %v2143 = vpack.c.b16 %v2140, %v2139
          %v2144 = vpack.c.b16 %v2142, %v2141
          %v2148 = vsel %vm766, %v2129, 0
          %2150 = vmatprep.subr.bf16.mxu0 0
          %2151 = vmatpush1.bf16.msra.mxu0 %v2143
          %2152 = vmatprep.subr.bf16.mxu0 0
          %2153 = vmatpush1.bf16.msra.mxu0 %v2144
          %2154 = vmatprep.subr.bf16.mxu0 0
          %2155 = vmatpush1.bf16.msra.mxu0 0
          %2156 = vmatprep.subr.bf16.mxu0 0
          %2157 = vmatpush1.bf16.msra.mxu0 0
          %2158 = vmatprep.subr.bf16.mxu0 0
          %2159 = vmatpush1.bf16.msra.mxu0 0
          %2160 = vmatprep.subr.bf16.mxu0 0
          %2161 = vmatpush1.bf16.msra.mxu0 0
          %2162 = vmatprep.subr.bf16.mxu0 0
          %2163 = vmatpush1.bf16.msra.mxu0 0
          %2164 = vmatprep.subr.bf16.mxu0 0
          %2165 = vmatpush1.bf16.msra.mxu0 0
          %2166 = vmatprep.subr.bf16.mxu0 0
          %2167 = vmatpush1.bf16.msra.mxu0 0
          %2168 = vmatprep.subr.bf16.mxu0 0
          %2169 = vmatpush1.bf16.msra.mxu0 0
          %2170 = vmatprep.subr.bf16.mxu0 0
          %2171 = vmatpush1.bf16.msra.mxu0 0
          %2172 = vmatprep.subr.bf16.mxu0 0
          %2173 = vmatpush1.bf16.msra.mxu0 0
          %2174 = vmatprep.subr.bf16.mxu0 0
          %2175 = vmatpush1.bf16.msra.mxu0 0
          %2176 = vmatprep.subr.bf16.mxu0 0
          %2177 = vmatpush1.bf16.msra.mxu0 0
          %2178 = vmatprep.subr.bf16.mxu0 0
          %2179 = vmatpush1.bf16.msra.mxu0 0
          %2180 = vmatprep.subr.bf16.mxu0 0
          %2181 = vmatpush1.bf16.msra.mxu0 0
          %2182 = vmatprep.mubr.bf16.mxu0 0
          %2183 = vmatmul.mubr.bf16.gmra.mrb[0].mxu0 %v2148
          %v2184 = vpop.f32.mrb[0].mxu0
          %v2185 = vadd.f32 %v2134, %v2184
          %v2186 = vpop.f32.mrb[0].mxu0
          %v2187 = vpop.f32.mrb[0].mxu0
          %v2188 = vpop.f32.mrb[0].mxu0
          %2189 = vdwg.mxu0
          %2190 = vst [vmem:[%s691] sm:$0x1] %v2185
        $region96: #{tpu_custom_call.1} parent=79 // pred_fallthru
          _
        %s2191 = sand.u32 %s435, 1
        %s2192 = scalar_lea.sflag [#allocation5], %s2191
        %s2193 = sand.u32 %s435, 1
        %s2194 = scalar_lea.vmem [#allocation8], %s2193
        // Predicated region
        $region97: #{tpu_custom_call.1} parent=79 // pred_check
          %p2195 = pneg %p445
        $region98: #{tpu_custom_call.1} parent=79 // pred_check_branch
          %2197 = sbr.rel (%p2195) target = $region100
        $region99: #{tpu_custom_call.1} parent=79 // pred_region
          %s2199 = ssub.s32 16, 16
          %2200 = vsyncadd %s2192, %s2199
          %s2201 = smul.addr %s39, 16
          %s2202 = scalar_lea.hbm %s15, %s2201
          %s2204 = sshll.u32 %s2194, 4
          %s2205 = int_to_ptr.vmem [resolvable:$true] %s2204
          %2207 = dma.vmem_to_hbm [thread:$0]  %s2205, 16, %s2202, %s2192
        $region100: #{tpu_custom_call.1} parent=79 // pred_fallthru
          _
      $region80: #{tpu_custom_call.1} parent=5 // pred_fallthru
        _
      %p2208 = scmp.le.s32.totalorder 2, %s30
      // Predicated region
      $region101: #{tpu_custom_call.1} parent=5 // pred_check
        %p2209 = pneg %p2208
      $region102: #{tpu_custom_call.1} parent=5 // pred_check_branch
        %2211 = sbr.rel (%p2209) target = $region104
      $region103: #{tpu_custom_call.1} parent=5 // pred_region
        %s2212 = ssub.s32 %s30, 2
        // Predicated region
        $region105: #{tpu_custom_call.1} parent=103 // pred_check
          %p2213 = pneg %p451
        $region106: #{tpu_custom_call.1} parent=103 // pred_check_branch
          %2215 = sbr.rel (%p2213) target = $region108
        $region107: #{tpu_custom_call.1} parent=103 // pred_region
          %s2216 = sand.u32 %s436, 1
          %s2217 = scalar_lea.sflag [#allocation5], %s2216
          %s2218 = sand.u32 %s436, 1
          %s2219 = scalar_lea.vmem [#allocation8], %s2218
          %2220 = dma.done %s2217, 16
        $region108: #{tpu_custom_call.1} parent=103 // pred_fallthru
          _
      $region104: #{tpu_custom_call.1} parent=5 // pred_fallthru
        _
    $region6: #{tpu_custom_call.1} parent=1 // loop_footer
      %s34 = sadd.s32 1, %s30
    $region7: #{tpu_custom_call.1} parent=1 // loop_footer_branch
      %29 = sbr.rel target = $region3
    $region8: #{tpu_custom_call.1} parent=1 // loop_exit
      _
    %2221 = vsyncpa [#allocation4], 1
    %s2222 = scalar_lea.sflag [#allocation4], 1
    %2223 = vsyncpa %s2222, 1
    %2224 = vsyncpa [#allocation7], 1
    %s2225 = scalar_lea.sflag [#allocation7], 1
    %2226 = vsyncpa %s2225, 1
    %2227 = vsyncpa [#allocation5], 1
    %s2228 = scalar_lea.sflag [#allocation5], 1
    %2229 = vsyncpa %s2228, 1

</llo_original>
